<compile_context>
chip_gen: v5e
topology: v5e:2x2
jax: 0.10.0
libtpu: 0.0.40
codegen_flags: <defaults>
</compile_context>

<pallas_src>
import jax
import jax.numpy as jnp
from jax import lax
from jax.experimental import pallas as pl
from jax.experimental.pallas import tpu as pltpu

EPS = 1e-5          # nn.LayerNorm default eps
LANE = 128          # TPU lane width (feature padding)
MXU_K = 128         # padding for the MXU contraction dims (N and M)

# dot_general dimension numbers for a transposed-lhs contraction: out = lhs^T @ rhs
TN_DIMS = (((0,), (0,)), ((), ()))


def _round_up(v, m):
    return ((v + m - 1) // m) * m


def _pad2(a, rows, cols):
    return jnp.pad(a, ((0, rows - a.shape[0]), (0, cols - a.shape[1])))


def _make_kernel(f1_out, f2_out):
    """Fused HGNN-layer kernel; f1_out / f2_out are the TRUE (unpadded) LayerNorm widths."""
    inv1 = 1.0 / float(f1_out)
    inv2 = 1.0 / float(f2_out)

    def layer_norm(n, g, be, inv_f):
        # Padded lanes of n are exactly 0, so they contribute nothing to either sum; gamma/beta
        # padded lanes are 0, so padded output lanes stay exactly 0 (feeds layer 2 cleanly).
        s1 = jnp.sum(n, axis=-1, keepdims=True)
        s2 = jnp.sum(n * n, axis=-1, keepdims=True)
        mu = s1 * inv_f
        var = jnp.maximum(s2 * inv_f - mu * mu, 0.0)   # clamp: cancellation safety
        rs = lax.rsqrt(var + EPS)
        return (n - mu) * (g * rs) + be

    def kernel(x_ref, h_ref, dinv_ref, binv_ref,
               w1_ref, b1_ref, g1_ref, be1_ref,
               w2_ref, b2_ref, g2_ref, be2_ref,
               o_ref):
        x = x_ref[...]          # [Np, Fp]  bf16 node features (zero-padded)
        h = h_ref[...]          # [Np, Mp]  bf16 unnormalized incidence (0/1 counts)
        dinv = dinv_ref[...]    # [Np, 1]   f32  1/node-degree
        binv = binv_ref[...]    # [Mp, 1]   f32  1/hyperedge-degree

        # ---------------- layer 1 (expanding F -> 2F): project at the hyperedge level ----------
        # e1 = B^{-1} H^T X
        e1 = lax.dot_general(h, x, TN_DIMS, preferred_element_type=jnp.float32)   # [Mp, Fp]
        e1 = (e1 * binv).astype(jnp.bfloat16)
        # ew1 = e1 @ W1   (exact reassociation of (H^T X W1))
        ew1 = jnp.dot(e1, w1_ref[...], preferred_element_type=jnp.float32)        # [Mp, F2p]
        # n1 = D^{-1} H ew1 + b1
        n1 = jnp.dot(h, ew1.astype(jnp.bfloat16),
                     preferred_element_type=jnp.float32)                          # [Np, F2p]
        n1 = n1 * dinv + b1_ref[...]
        n1 = jnp.maximum(n1, 0.0)                                                 # ReLU
        # TODO(synk): Dropout is identity (inference); training-mode dropout would draw a mask
        # via pltpu.prng_seed + pltpu.prng_random_bits.
        h1 = layer_norm(n1, g1_ref[...], be1_ref[...], inv1)                      # [Np, F2p] f32

        # ---------------- layer 2 (contracting 2F -> F): project at the node level --------------
        hw = jnp.dot(h1.astype(jnp.bfloat16), w2_ref[...],
                     preferred_element_type=jnp.float32)                          # [Np, Fp]
        e2 = lax.dot_general(h, hw.astype(jnp.bfloat16), TN_DIMS,
                             preferred_element_type=jnp.float32)                  # [Mp, Fp]
        e2 = (e2 * binv).astype(jnp.bfloat16)
        n2 = jnp.dot(h, e2, preferred_element_type=jnp.float32)                   # [Np, Fp]
        n2 = n2 * dinv + b2_ref[...]
        n2 = jnp.maximum(n2, 0.0)
        o_ref[...] = layer_norm(n2, g2_ref[...], be2_ref[...], inv2)

    return kernel


def _vmem_limit_bytes(operand_bytes, out_bytes, inter_bytes):
    """Generation-aware VMEM budget: 85% of physical, never below 16 MiB, never above need."""
    try:
        cap = int(getattr(pltpu.get_tpu_info(), "vmem_capacity_bytes", 0)) or (64 << 20)
    except Exception:  # conservative fallback (v7x physical VMEM)
        cap = 64 << 20
    budget = int(0.85 * cap)
    needed = int(1.5 * (operand_bytes + out_bytes + inter_bytes))   # headroom for scratch/copies
    return int(min(max(needed, 16 << 20), budget))


def hgnn_layer(x, edge_index, params, num_edges):
    """x: [N, F] f32 node features; edge_index: [2, E] int32 (row0 = node, row1 = hyperedge)."""
    N, F = x.shape
    F2 = params["w1"].shape[1]
    M = num_edges

    # --- glue (XLA side): dense incidence + degree normalizer vectors ----------------------
    H = jnp.zeros((N, M), jnp.float32).at[edge_index[0], edge_index[1]].add(1.0)
    deg_n = H.sum(axis=1, keepdims=True)                       # D  [N, 1]
    deg_e = H.sum(axis=0, keepdims=True).T                     # B  [M, 1]
    dinv = jnp.where(deg_n > 0, 1.0 / deg_n, 0.0)
    binv = jnp.where(deg_e > 0, 1.0 / deg_e, 0.0)

    # --- pad: features -> 128 lanes; nodes/edges (MXU contraction dims) -> 128 --------------
    Np, Mp = _round_up(N, MXU_K), _round_up(M, MXU_K)
    Fp, F2p = _round_up(F, LANE), _round_up(F2, LANE)

    x_p = _pad2(x, Np, Fp).astype(jnp.bfloat16)                # consumed only as bf16 MXU operand
    h_p = _pad2(H, Np, Mp).astype(jnp.bfloat16)                # 0/1 entries: exact in bf16
    dinv_p = _pad2(dinv, Np, 1)
    binv_p = _pad2(binv, Mp, 1)
    w1_p = _pad2(params["w1"], Fp, F2p).astype(jnp.bfloat16)
    w2_p = _pad2(params["w2"], F2p, Fp).astype(jnp.bfloat16)
    b1_p, g1_p, be1_p = (_pad2(params[k], 1, F2p) for k in ("b1", "g1", "beta1"))
    b2_p, g2_p, be2_p = (_pad2(params[k], 1, Fp) for k in ("b2", "g2", "beta2"))

    operands = (x_p, h_p, dinv_p, binv_p,
                w1_p, b1_p, g1_p, be1_p,
                w2_p, b2_p, g2_p, be2_p)

    operand_bytes = sum(int(a.size) * a.dtype.itemsize for a in operands)
    out_bytes = Np * Fp * 4
    # in-kernel intermediates (f32 + bf16 copies of e1, ew1, n1/h1, hw, e2, n2)
    inter_bytes = 6 * (Mp * Fp + Mp * F2p + Np * F2p + Np * Fp)
    vmem_limit = _vmem_limit_bytes(operand_bytes, out_bytes, inter_bytes)

    # Whole-array VMEM residency (fits easily at toy/medium sizes) — see TODO(synk) at top for
    # the large-graph tiling plan (parallel node-row axis, "arbitrary" contraction axis, H reuse).
    vmem = pl.BlockSpec(memory_space=pltpu.MemorySpace.VMEM)

    out_p = pl.pallas_call(
        _make_kernel(F2, F),
        out_shape=jax.ShapeDtypeStruct((Np, Fp), jnp.float32),
        in_specs=[vmem] * len(operands),
        out_specs=vmem,
        compiler_params=pltpu.CompilerParams(vmem_limit_bytes=vmem_limit),
    )(*operands)

    return out_p[:N, :F]


def init_params(key, hidden_dim):
    """Deterministic init matching the module's parameter shapes.
       gnn1: hidden -> 2*hidden, gnn2: 2*hidden -> hidden (glorot weights, zero biases).
       norm1: LayerNorm(2*hidden), norm2: LayerNorm(hidden) (gamma=1, beta=0)."""
    k1, k2 = jax.random.split(key)
    f, f2 = hidden_dim, 2 * hidden_dim

    def glorot(k, fan_in, fan_out):
        lim = jnp.sqrt(6.0 / (fan_in + fan_out))
        return jax.random.uniform(k, (fan_in, fan_out), jnp.float32, -lim, lim)

    return {
        "w1": glorot(k1, f, f2),
        "b1": jnp.zeros((1, f2), jnp.float32),
        "g1": jnp.ones((1, f2), jnp.float32),
        "beta1": jnp.zeros((1, f2), jnp.float32),
        "w2": glorot(k2, f2, f),
        "b2": jnp.zeros((1, f), jnp.float32),
        "g2": jnp.ones((1, f), jnp.float32),
        "beta2": jnp.zeros((1, f), jnp.float32),
    }


if __name__ == "__main__":
    hidden_dim = 32
    num_nodes = 8
    num_edges = 4

    key = jax.random.PRNGKey(0)
    kx, kp = jax.random.split(key)

    x = jax.random.normal(kx, (num_nodes, hidden_dim), jnp.float32)
    # Small deterministic hypergraph: 4 hyperedges over 8 nodes.
    edge_index = jnp.array(
        [[0, 1, 2, 2, 3, 4, 4, 5, 6, 6, 7, 0, 1, 5],
         [0, 0, 0, 1, 1, 1, 2, 2, 2, 3, 3, 3, 0, 3]], dtype=jnp.int32)

    params = init_params(kp, hidden_dim)

    out = hgnn_layer(x, edge_index, params, num_edges)
    jax.block_until_ready(out)
    assert out.shape == (num_nodes, hidden_dim)
    assert bool(jnp.all(jnp.isfinite(out)))
    print("KERNEL_OK")
</pallas_src>

<mosaic_0001>
module attributes {stable_mosaic.version = 11 : i64} {
  func.func @kernel(%arg0: memref<128x128xbf16, #tpu.memory_space<vmem>>, %arg1: memref<128x128xbf16, #tpu.memory_space<vmem>>, %arg2: memref<128x1xf32, #tpu.memory_space<vmem>>, %arg3: memref<128x1xf32, #tpu.memory_space<vmem>>, %arg4: memref<128x128xbf16, #tpu.memory_space<vmem>>, %arg5: memref<1x128xf32, #tpu.memory_space<vmem>>, %arg6: memref<1x128xf32, #tpu.memory_space<vmem>>, %arg7: memref<1x128xf32, #tpu.memory_space<vmem>>, %arg8: memref<128x128xbf16, #tpu.memory_space<vmem>>, %arg9: memref<1x128xf32, #tpu.memory_space<vmem>>, %arg10: memref<1x128xf32, #tpu.memory_space<vmem>>, %arg11: memref<1x128xf32, #tpu.memory_space<vmem>>, %arg12: memref<128x128xf32, #tpu.memory_space<vmem>>) attributes {dimension_semantics = [], scalar_prefetch = 0 : i64, scratch_operands = 0 : i64, tpu.core_type = #tpu.core_type<tc>} {
    %c0 = arith.constant 0 : index
    %c0_0 = arith.constant 0 : index
    %0 = vector.load %arg0[%c0, %c0_0] : memref<128x128xbf16, #tpu.memory_space<vmem>>, vector<128x128xbf16>
    %c0_1 = arith.constant 0 : index
    %c0_2 = arith.constant 0 : index
    %1 = vector.load %arg1[%c0_1, %c0_2] : memref<128x128xbf16, #tpu.memory_space<vmem>>, vector<128x128xbf16>
    %c0_3 = arith.constant 0 : index
    %c0_4 = arith.constant 0 : index
    %2 = vector.load %arg2[%c0_3, %c0_4] : memref<128x1xf32, #tpu.memory_space<vmem>>, vector<128x1xf32>
    %c0_5 = arith.constant 0 : index
    %c0_6 = arith.constant 0 : index
    %3 = vector.load %arg3[%c0_5, %c0_6] : memref<128x1xf32, #tpu.memory_space<vmem>>, vector<128x1xf32>
    %cst = arith.constant dense<0.000000e+00> : vector<128x128xf32>
    %4 = tpu.matmul %1, %0, %cst {dimension_numbers = #tpu.dot_dimension_numbers<[0], [0], [1], [1], [0, 1, 1, 1], [], []>} : vector<128x128xbf16>, vector<128x128xbf16>, vector<128x128xf32> -> vector<128x128xf32>
    %5 = vector.broadcast %3 : vector<128x1xf32> to vector<128x128xf32>
    %6 = arith.mulf %4, %5 : vector<128x128xf32>
    %7 = arith.truncf %6 : vector<128x128xf32> to vector<128x128xbf16>
    %c0_7 = arith.constant 0 : index
    %c0_8 = arith.constant 0 : index
    %8 = vector.load %arg4[%c0_7, %c0_8] : memref<128x128xbf16, #tpu.memory_space<vmem>>, vector<128x128xbf16>
    %cst_9 = arith.constant dense<0.000000e+00> : vector<128x128xf32>
    %9 = tpu.matmul %7, %8, %cst_9 {dimension_numbers = #tpu.dot_dimension_numbers<[1], [0], [0], [1], [0, 0, 1, 1], [], []>} : vector<128x128xbf16>, vector<128x128xbf16>, vector<128x128xf32> -> vector<128x128xf32>
    %10 = arith.truncf %9 : vector<128x128xf32> to vector<128x128xbf16>
    %cst_10 = arith.constant dense<0.000000e+00> : vector<128x128xf32>
    %11 = tpu.matmul %1, %10, %cst_10 {dimension_numbers = #tpu.dot_dimension_numbers<[1], [0], [0], [1], [0, 0, 1, 1], [], []>} : vector<128x128xbf16>, vector<128x128xbf16>, vector<128x128xf32> -> vector<128x128xf32>
    %12 = vector.broadcast %2 : vector<128x1xf32> to vector<128x128xf32>
    %13 = arith.mulf %11, %12 : vector<128x128xf32>
    %c0_11 = arith.constant 0 : index
    %c0_12 = arith.constant 0 : index
    %14 = vector.load %arg5[%c0_11, %c0_12] : memref<1x128xf32, #tpu.memory_space<vmem>>, vector<1x128xf32>
    %15 = vector.broadcast %14 : vector<1x128xf32> to vector<128x128xf32>
    %16 = arith.addf %13, %15 : vector<128x128xf32>
    %cst_13 = arith.constant 0.000000e+00 : f32
    %17 = vector.broadcast %cst_13 : f32 to vector<128x128xf32>
    %18 = arith.maximumf %16, %17 : vector<128x128xf32>
    %c0_14 = arith.constant 0 : index
    %c0_15 = arith.constant 0 : index
    %19 = vector.load %arg6[%c0_14, %c0_15] : memref<1x128xf32, #tpu.memory_space<vmem>>, vector<1x128xf32>
    %c0_16 = arith.constant 0 : index
    %c0_17 = arith.constant 0 : index
    %20 = vector.load %arg7[%c0_16, %c0_17] : memref<1x128xf32, #tpu.memory_space<vmem>>, vector<1x128xf32>
    %cst_18 = arith.constant dense<0.000000e+00> : vector<128xf32>
    %21 = vector.multi_reduction <add>, %18, %cst_18 [1] : vector<128x128xf32> to vector<128xf32>
    %22 = vector.shape_cast %21 : vector<128xf32> to vector<128x1xf32>
    %23 = arith.mulf %18, %18 : vector<128x128xf32>
    %cst_19 = arith.constant dense<0.000000e+00> : vector<128xf32>
    %24 = vector.multi_reduction <add>, %23, %cst_19 [1] : vector<128x128xf32> to vector<128xf32>
    %25 = vector.shape_cast %24 : vector<128xf32> to vector<128x1xf32>
    %cst_20 = arith.constant 1.562500e-02 : f32
    %26 = vector.broadcast %cst_20 : f32 to vector<128x1xf32>
    %27 = arith.mulf %22, %26 : vector<128x1xf32>
    %cst_21 = arith.constant 1.562500e-02 : f32
    %28 = vector.broadcast %cst_21 : f32 to vector<128x1xf32>
    %29 = arith.mulf %25, %28 : vector<128x1xf32>
    %30 = arith.mulf %27, %27 : vector<128x1xf32>
    %31 = arith.subf %29, %30 : vector<128x1xf32>
    %cst_22 = arith.constant 0.000000e+00 : f32
    %32 = vector.broadcast %cst_22 : f32 to vector<128x1xf32>
    %33 = arith.maximumf %31, %32 : vector<128x1xf32>
    %cst_23 = arith.constant 9.99999974E-6 : f32
    %34 = vector.broadcast %cst_23 : f32 to vector<128x1xf32>
    %35 = arith.addf %33, %34 : vector<128x1xf32>
    %36 = math.rsqrt %35 : vector<128x1xf32>
    %37 = vector.broadcast %27 : vector<128x1xf32> to vector<128x128xf32>
    %38 = arith.subf %18, %37 : vector<128x128xf32>
    %39 = vector.broadcast %19 : vector<1x128xf32> to vector<128x128xf32>
    %40 = vector.broadcast %36 : vector<128x1xf32> to vector<128x128xf32>
    %41 = arith.mulf %39, %40 : vector<128x128xf32>
    %42 = arith.mulf %38, %41 : vector<128x128xf32>
    %43 = vector.broadcast %20 : vector<1x128xf32> to vector<128x128xf32>
    %44 = arith.addf %42, %43 : vector<128x128xf32>
    %45 = arith.truncf %44 : vector<128x128xf32> to vector<128x128xbf16>
    %c0_24 = arith.constant 0 : index
    %c0_25 = arith.constant 0 : index
    %46 = vector.load %arg8[%c0_24, %c0_25] : memref<128x128xbf16, #tpu.memory_space<vmem>>, vector<128x128xbf16>
    %cst_26 = arith.constant dense<0.000000e+00> : vector<128x128xf32>
    %47 = tpu.matmul %45, %46, %cst_26 {dimension_numbers = #tpu.dot_dimension_numbers<[1], [0], [0], [1], [0, 0, 1, 1], [], []>} : vector<128x128xbf16>, vector<128x128xbf16>, vector<128x128xf32> -> vector<128x128xf32>
    %48 = arith.truncf %47 : vector<128x128xf32> to vector<128x128xbf16>
    %cst_27 = arith.constant dense<0.000000e+00> : vector<128x128xf32>
    %49 = tpu.matmul %1, %48, %cst_27 {dimension_numbers = #tpu.dot_dimension_numbers<[0], [0], [1], [1], [0, 1, 1, 1], [], []>} : vector<128x128xbf16>, vector<128x128xbf16>, vector<128x128xf32> -> vector<128x128xf32>
    %50 = vector.broadcast %3 : vector<128x1xf32> to vector<128x128xf32>
    %51 = arith.mulf %49, %50 : vector<128x128xf32>
    %52 = arith.truncf %51 : vector<128x128xf32> to vector<128x128xbf16>
    %cst_28 = arith.constant dense<0.000000e+00> : vector<128x128xf32>
    %53 = tpu.matmul %1, %52, %cst_28 {dimension_numbers = #tpu.dot_dimension_numbers<[1], [0], [0], [1], [0, 0, 1, 1], [], []>} : vector<128x128xbf16>, vector<128x128xbf16>, vector<128x128xf32> -> vector<128x128xf32>
    %54 = vector.broadcast %2 : vector<128x1xf32> to vector<128x128xf32>
    %55 = arith.mulf %53, %54 : vector<128x128xf32>
    %c0_29 = arith.constant 0 : index
    %c0_30 = arith.constant 0 : index
    %56 = vector.load %arg9[%c0_29, %c0_30] : memref<1x128xf32, #tpu.memory_space<vmem>>, vector<1x128xf32>
    %57 = vector.broadcast %56 : vector<1x128xf32> to vector<128x128xf32>
    %58 = arith.addf %55, %57 : vector<128x128xf32>
    %cst_31 = arith.constant 0.000000e+00 : f32
    %59 = vector.broadcast %cst_31 : f32 to vector<128x128xf32>
    %60 = arith.maximumf %58, %59 : vector<128x128xf32>
    %c0_32 = arith.constant 0 : index
    %c0_33 = arith.constant 0 : index
    %61 = vector.load %arg10[%c0_32, %c0_33] : memref<1x128xf32, #tpu.memory_space<vmem>>, vector<1x128xf32>
    %c0_34 = arith.constant 0 : index
    %c0_35 = arith.constant 0 : index
    %62 = vector.load %arg11[%c0_34, %c0_35] : memref<1x128xf32, #tpu.memory_space<vmem>>, vector<1x128xf32>
    %cst_36 = arith.constant dense<0.000000e+00> : vector<128xf32>
    %63 = vector.multi_reduction <add>, %60, %cst_36 [1] : vector<128x128xf32> to vector<128xf32>
    %64 = vector.shape_cast %63 : vector<128xf32> to vector<128x1xf32>
    %65 = arith.mulf %60, %60 : vector<128x128xf32>
    %cst_37 = arith.constant dense<0.000000e+00> : vector<128xf32>
    %66 = vector.multi_reduction <add>, %65, %cst_37 [1] : vector<128x128xf32> to vector<128xf32>
    %67 = vector.shape_cast %66 : vector<128xf32> to vector<128x1xf32>
    %cst_38 = arith.constant 3.125000e-02 : f32
    %68 = vector.broadcast %cst_38 : f32 to vector<128x1xf32>
    %69 = arith.mulf %64, %68 : vector<128x1xf32>
    %cst_39 = arith.constant 3.125000e-02 : f32
    %70 = vector.broadcast %cst_39 : f32 to vector<128x1xf32>
    %71 = arith.mulf %67, %70 : vector<128x1xf32>
    %72 = arith.mulf %69, %69 : vector<128x1xf32>
    %73 = arith.subf %71, %72 : vector<128x1xf32>
    %cst_40 = arith.constant 0.000000e+00 : f32
    %74 = vector.broadcast %cst_40 : f32 to vector<128x1xf32>
    %75 = arith.maximumf %73, %74 : vector<128x1xf32>
    %cst_41 = arith.constant 9.99999974E-6 : f32
    %76 = vector.broadcast %cst_41 : f32 to vector<128x1xf32>
    %77 = arith.addf %75, %76 : vector<128x1xf32>
    %78 = math.rsqrt %77 : vector<128x1xf32>
    %79 = vector.broadcast %69 : vector<128x1xf32> to vector<128x128xf32>
    %80 = arith.subf %60, %79 : vector<128x128xf32>
    %81 = vector.broadcast %61 : vector<1x128xf32> to vector<128x128xf32>
    %82 = vector.broadcast %78 : vector<128x1xf32> to vector<128x128xf32>
    %83 = arith.mulf %81, %82 : vector<128x128xf32>
    %84 = arith.mulf %80, %83 : vector<128x128xf32>
    %85 = vector.broadcast %62 : vector<1x128xf32> to vector<128x128xf32>
    %86 = arith.addf %84, %85 : vector<128x128xf32>
    %c0_42 = arith.constant 0 : index
    %c0_43 = arith.constant 0 : index
    %87 = vector.load %arg12[%c0_42, %c0_43] : memref<128x128xf32, #tpu.memory_space<vmem>>, vector<128x128xf32>
    tpu.vector_store %arg12[%c0_42, %c0_43], %86 {strides = array<i32>} : memref<128x128xf32, #tpu.memory_space<vmem>>, vector<128x128xf32>,
    return
  }
}

</mosaic_0001>

<llo_original>
// kernel: tpu_custom_call.1
$region0: #{tpu_custom_call.1}
  #allocation0 [shape = 'u32[]', space=smem, size = 0x4, offset = 0x4, fixed_abs, tag = 'smem constant byte address 0x4 - core index']
  #allocation1 [shape = 'u32[72,128]{1,0:T(1,128)}', space=vmem, size = 0x9000, scoped, tag = 'internal scratch']
  %s0 = inlined_call_operand.vmem [shape: bf16[128,128], index: 0, kind: input, shape index: {}]
  %s1 = inlined_call_operand.vmem [shape: bf16[128,128], index: 1, kind: input, shape index: {}]
  %s2 = inlined_call_operand.vmem [shape: f32[128,1], index: 2, kind: input, shape index: {}]
  %s3 = inlined_call_operand.vmem [shape: f32[128,1], index: 3, kind: input, shape index: {}]
  %s4 = inlined_call_operand.vmem [shape: bf16[128,128], index: 4, kind: input, shape index: {}]
  %s5 = inlined_call_operand.vmem [shape: f32[1,128], index: 5, kind: input, shape index: {}]
  %s6 = inlined_call_operand.vmem [shape: f32[1,128], index: 6, kind: input, shape index: {}]
  %s7 = inlined_call_operand.vmem [shape: f32[1,128], index: 7, kind: input, shape index: {}]
  %s8 = inlined_call_operand.vmem [shape: bf16[128,128], index: 8, kind: input, shape index: {}]
  %s9 = inlined_call_operand.vmem [shape: f32[1,128], index: 9, kind: input, shape index: {}]
  %s10 = inlined_call_operand.vmem [shape: f32[1,128], index: 10, kind: input, shape index: {}]
  %s11 = inlined_call_operand.vmem [shape: f32[1,128], index: 11, kind: input, shape index: {}]
  %s12 = inlined_call_operand.hbm [shape: f32[128,128], index: 12, kind: output, shape index: {}]
  %s13 = sld [smem:[#allocation0]]
  $region58: #{tpu_custom_call.1} parent=0
    _
  %s15 = ssub.s32 1, %s13
  %s16 = scalar_select 0, %s15, %s13
  $region1: #{tpu_custom_call.1} parent=0
    #allocation2 [shape = 'u8[65536]{0}', space=vmem, size = 0x10000, scoped, tag = 'output window, operand 0, single buffered']
    #allocation3 [shape = 's32[1]{0}', space=sflag, size = 0x4, scoped, tag = 'scoped memory for tpu_custom_call.1']
    %17 = vsyncpa [#allocation3], 0
    // Predicated region
    $region2: #{tpu_custom_call.1} parent=1 // pred_check
      _
    $region3: #{tpu_custom_call.1} parent=1 // pred_check_branch
      %19 = sbr.rel (0) target = $region5
    $region4: #{tpu_custom_call.1} parent=1 // pred_region
      _
    $region5: #{tpu_custom_call.1} parent=1 // pred_fallthru
      _
    // Predicated region
    $region6: #{tpu_custom_call.1} parent=1 // pred_check
      _
    $region7: #{tpu_custom_call.1} parent=1 // pred_check_branch
      %21 = sbr.rel (0) target = $region9
    $region8: #{tpu_custom_call.1} parent=1 // pred_region
      _
    $region9: #{tpu_custom_call.1} parent=1 // pred_fallthru
      _
    // Predicated region
    $region10: #{tpu_custom_call.1} parent=1 // pred_check
      _
    $region11: #{tpu_custom_call.1} parent=1 // pred_check_branch
      %23 = sbr.rel (0) target = $region13
    $region12: #{tpu_custom_call.1} parent=1 // pred_region
      _
    $region13: #{tpu_custom_call.1} parent=1 // pred_fallthru
      _
    // Predicated region
    $region14: #{tpu_custom_call.1} parent=1 // pred_check
      _
    $region15: #{tpu_custom_call.1} parent=1 // pred_check_branch
      %25 = sbr.rel (0) target = $region17
    $region16: #{tpu_custom_call.1} parent=1 // pred_region
      _
    $region17: #{tpu_custom_call.1} parent=1 // pred_fallthru
      _
    // Predicated region
    $region18: #{tpu_custom_call.1} parent=1 // pred_check
      _
    $region19: #{tpu_custom_call.1} parent=1 // pred_check_branch
      %27 = sbr.rel (0) target = $region21
    $region20: #{tpu_custom_call.1} parent=1 // pred_region
      _
    $region21: #{tpu_custom_call.1} parent=1 // pred_fallthru
      _
    // Predicated region
    $region22: #{tpu_custom_call.1} parent=1 // pred_check
      _
    $region23: #{tpu_custom_call.1} parent=1 // pred_check_branch
      %29 = sbr.rel (0) target = $region25
    $region24: #{tpu_custom_call.1} parent=1 // pred_region
      _
    $region25: #{tpu_custom_call.1} parent=1 // pred_fallthru
      _
    // Predicated region
    $region26: #{tpu_custom_call.1} parent=1 // pred_check
      _
    $region27: #{tpu_custom_call.1} parent=1 // pred_check_branch
      %31 = sbr.rel (0) target = $region29
    $region28: #{tpu_custom_call.1} parent=1 // pred_region
      _
    $region29: #{tpu_custom_call.1} parent=1 // pred_fallthru
      _
    // Predicated region
    $region30: #{tpu_custom_call.1} parent=1 // pred_check
      _
    $region31: #{tpu_custom_call.1} parent=1 // pred_check_branch
      %33 = sbr.rel (0) target = $region33
    $region32: #{tpu_custom_call.1} parent=1 // pred_region
      _
    $region33: #{tpu_custom_call.1} parent=1 // pred_fallthru
      _
    // Predicated region
    $region34: #{tpu_custom_call.1} parent=1 // pred_check
      _
    $region35: #{tpu_custom_call.1} parent=1 // pred_check_branch
      %35 = sbr.rel (0) target = $region37
    $region36: #{tpu_custom_call.1} parent=1 // pred_region
      _
    $region37: #{tpu_custom_call.1} parent=1 // pred_fallthru
      _
    // Predicated region
    $region38: #{tpu_custom_call.1} parent=1 // pred_check
      _
    $region39: #{tpu_custom_call.1} parent=1 // pred_check_branch
      %37 = sbr.rel (0) target = $region41
    $region40: #{tpu_custom_call.1} parent=1 // pred_region
      _
    $region41: #{tpu_custom_call.1} parent=1 // pred_fallthru
      _
    // Predicated region
    $region42: #{tpu_custom_call.1} parent=1 // pred_check
      _
    $region43: #{tpu_custom_call.1} parent=1 // pred_check_branch
      %39 = sbr.rel (0) target = $region45
    $region44: #{tpu_custom_call.1} parent=1 // pred_region
      _
    $region45: #{tpu_custom_call.1} parent=1 // pred_fallthru
      _
    // Predicated region
    $region46: #{tpu_custom_call.1} parent=1 // pred_check
      _
    $region47: #{tpu_custom_call.1} parent=1 // pred_check_branch
      %41 = sbr.rel (0) target = $region49
    $region48: #{tpu_custom_call.1} parent=1 // pred_region
      _
    $region49: #{tpu_custom_call.1} parent=1 // pred_fallthru
      _
    %v42 = vld [vmem:[%s0] sm:$0xf]
    %v43 = vld [vmem:[%s0 + $0x4] sm:$0xf]
    %v44 = vld [vmem:[%s0 + $0x8] sm:$0xf]
    %v45 = vld [vmem:[%s0 + $0xc] sm:$0xf]
    %v46 = vld [vmem:[%s0 + $0x10] sm:$0xf]
    %v47 = vld [vmem:[%s0 + $0x14] sm:$0xf]
    %v48 = vld [vmem:[%s0 + $0x18] sm:$0xf]
    %v49 = vld [vmem:[%s0 + $0x1c] sm:$0xf]
    %v50 = vld [vmem:[%s0 + $0x20] sm:$0xf]
    %v51 = vld [vmem:[%s0 + $0x24] sm:$0xf]
    %v52 = vld [vmem:[%s0 + $0x28] sm:$0xf]
    %v53 = vld [vmem:[%s0 + $0x2c] sm:$0xf]
    %v54 = vld [vmem:[%s0 + $0x30] sm:$0xf]
    %v55 = vld [vmem:[%s0 + $0x34] sm:$0xf]
    %v56 = vld [vmem:[%s0 + $0x38] sm:$0xf]
    %v57 = vld [vmem:[%s0 + $0x3c] sm:$0xf]
    %v58 = vld [vmem:[%s1] sm:$0xf]
    %v59 = vld [vmem:[%s1 + $0x4] sm:$0xf]
    %v60 = vld [vmem:[%s1 + $0x8] sm:$0xf]
    %v61 = vld [vmem:[%s1 + $0xc] sm:$0xf]
    %v62 = vld [vmem:[%s1 + $0x10] sm:$0xf]
    %v63 = vld [vmem:[%s1 + $0x14] sm:$0xf]
    %v64 = vld [vmem:[%s1 + $0x18] sm:$0xf]
    %v65 = vld [vmem:[%s1 + $0x1c] sm:$0xf]
    %v66 = vld [vmem:[%s1 + $0x20] sm:$0xf]
    %v67 = vld [vmem:[%s1 + $0x24] sm:$0xf]
    %v68 = vld [vmem:[%s1 + $0x28] sm:$0xf]
    %v69 = vld [vmem:[%s1 + $0x2c] sm:$0xf]
    %v70 = vld [vmem:[%s1 + $0x30] sm:$0xf]
    %v71 = vld [vmem:[%s1 + $0x34] sm:$0xf]
    %v72 = vld [vmem:[%s1 + $0x38] sm:$0xf]
    %v73 = vld [vmem:[%s1 + $0x3c] sm:$0xf]
    %v74 = vld [vmem:[%s2] sm:$0xff]
    %v75 = vld [vmem:[%s2 + $0x8] sm:$0xff]
    %v76 = vld [vmem:[%s2 + $0x10] sm:$0xff]
    %v77 = vld [vmem:[%s2 + $0x18] sm:$0xff]
    %v78 = vld [vmem:[%s2 + $0x20] sm:$0xff]
    %v79 = vld [vmem:[%s2 + $0x28] sm:$0xff]
    %v80 = vld [vmem:[%s2 + $0x30] sm:$0xff]
    %v81 = vld [vmem:[%s2 + $0x38] sm:$0xff]
    %v82 = vld [vmem:[%s2 + $0x40] sm:$0xff]
    %v83 = vld [vmem:[%s2 + $0x48] sm:$0xff]
    %v84 = vld [vmem:[%s2 + $0x50] sm:$0xff]
    %v85 = vld [vmem:[%s2 + $0x58] sm:$0xff]
    %v86 = vld [vmem:[%s2 + $0x60] sm:$0xff]
    %v87 = vld [vmem:[%s2 + $0x68] sm:$0xff]
    %v88 = vld [vmem:[%s2 + $0x70] sm:$0xff]
    %v89 = vld [vmem:[%s2 + $0x78] sm:$0xff]
    %v90 = vld [vmem:[%s3] sm:$0xff]
    %v91 = vld [vmem:[%s3 + $0x8] sm:$0xff]
    %v92 = vld [vmem:[%s3 + $0x10] sm:$0xff]
    %v93 = vld [vmem:[%s3 + $0x18] sm:$0xff]
    %v94 = vld [vmem:[%s3 + $0x20] sm:$0xff]
    %v95 = vld [vmem:[%s3 + $0x28] sm:$0xff]
    %v96 = vld [vmem:[%s3 + $0x30] sm:$0xff]
    %v97 = vld [vmem:[%s3 + $0x38] sm:$0xff]
    %v98 = vld [vmem:[%s3 + $0x40] sm:$0xff]
    %v99 = vld [vmem:[%s3 + $0x48] sm:$0xff]
    %v100 = vld [vmem:[%s3 + $0x50] sm:$0xff]
    %v101 = vld [vmem:[%s3 + $0x58] sm:$0xff]
    %v102 = vld [vmem:[%s3 + $0x60] sm:$0xff]
    %v103 = vld [vmem:[%s3 + $0x68] sm:$0xff]
    %v104 = vld [vmem:[%s3 + $0x70] sm:$0xff]
    %v105 = vld [vmem:[%s3 + $0x78] sm:$0xff]
    %v122 = vunpack.c.l.b16 %v58
    %v123 = vunpack.c.l.b16 %v59
    %v124 = vunpack.c.l.b16 %v60
    %v125 = vunpack.c.l.b16 %v61
    %v126 = vunpack.c.l.b16 %v62
    %v127 = vunpack.c.l.b16 %v63
    %v128 = vunpack.c.l.b16 %v64
    %v129 = vunpack.c.l.b16 %v65
    %v130 = vunpack.c.l.b16 %v66
    %v131 = vunpack.c.l.b16 %v67
    %v132 = vunpack.c.l.b16 %v68
    %v133 = vunpack.c.l.b16 %v69
    %v134 = vunpack.c.l.b16 %v70
    %v135 = vunpack.c.l.b16 %v71
    %v136 = vunpack.c.l.b16 %v72
    %v137 = vunpack.c.l.b16 %v73
    %v138 = vpack.c.b16 %v123, %v122
    %v139 = vpack.c.b16 %v125, %v124
    %v140 = vpack.c.b16 %v127, %v126
    %v141 = vpack.c.b16 %v129, %v128
    %v142 = vpack.c.b16 %v131, %v130
    %v143 = vpack.c.b16 %v133, %v132
    %v144 = vpack.c.b16 %v135, %v134
    %v145 = vpack.c.b16 %v137, %v136
    %154 = vxpose.xlu0.c.b16.start [1/8] %v138, 128
    %155 = vxpose.xlu0.c.b16.cont [2/8] %v139, 128
    %156 = vxpose.xlu0.c.b16.cont [3/8] %v140, 128
    %157 = vxpose.xlu0.c.b16.cont [4/8] %v141, 128
    %158 = vxpose.xlu0.c.b16.cont [5/8] %v142, 128
    %159 = vxpose.xlu0.c.b16.cont [6/8] %v143, 128
    %160 = vxpose.xlu0.c.b16.cont [7/8] %v144, 128
    %161 = vxpose.xlu0.c.b16.end [8/8] %v145, 128
    %v162 = vpop.trf.xlu0
    %v163 = vpop.trf.xlu0
    %v164 = vpop.trf.xlu0
    %v165 = vpop.trf.xlu0
    %v166 = vpop.trf.xlu0
    %v167 = vpop.trf.xlu0
    %v168 = vpop.trf.xlu0
    %v169 = vpop.trf.xlu0
    %v186 = vunpack.c.l.b16 %v42
    %v187 = vunpack.c.l.b16 %v43
    %v188 = vunpack.c.l.b16 %v44
    %v189 = vunpack.c.l.b16 %v45
    %v190 = vunpack.c.l.b16 %v46
    %v191 = vunpack.c.l.b16 %v47
    %v192 = vunpack.c.l.b16 %v48
    %v193 = vunpack.c.l.b16 %v49
    %v194 = vunpack.c.l.b16 %v50
    %v195 = vunpack.c.l.b16 %v51
    %v196 = vunpack.c.l.b16 %v52
    %v197 = vunpack.c.l.b16 %v53
    %v198 = vunpack.c.l.b16 %v54
    %v199 = vunpack.c.l.b16 %v55
    %v200 = vunpack.c.l.b16 %v56
    %v201 = vunpack.c.l.b16 %v57
    %v202 = vpack.c.b16 %v187, %v186
    %v203 = vpack.c.b16 %v189, %v188
    %v204 = vpack.c.b16 %v191, %v190
    %v205 = vpack.c.b16 %v193, %v192
    %v206 = vpack.c.b16 %v195, %v194
    %v207 = vpack.c.b16 %v197, %v196
    %v208 = vpack.c.b16 %v199, %v198
    %v209 = vpack.c.b16 %v201, %v200
    %218 = vmatpush.bf16.msra.mxu0 %v209
    %219 = vmatpush.bf16.msra.mxu0 %v208
    %220 = vmatpush.bf16.msra.mxu0 %v207
    %221 = vmatpush.bf16.msra.mxu0 %v206
    %222 = vmatpush.bf16.msra.mxu0 %v205
    %223 = vmatpush.bf16.msra.mxu0 %v204
    %224 = vmatpush.bf16.msra.mxu0 %v203
    %225 = vmatpush.bf16.msra.mxu0 %v202
    %226 = vmatmul.bf16.gmra.mxu0 %v162
    %v227 = vpop.f32.mrf.mxu0
    %v228 = vadd.f32 0.0, %v227
    %v229 = vpop.f32.mrf.mxu0
    %v230 = vadd.f32 0.0, %v229
    %231 = vmatmul.bf16.gmra.mxu0 %v163
    %v232 = vpop.f32.mrf.mxu0
    %v233 = vadd.f32 0.0, %v232
    %v234 = vpop.f32.mrf.mxu0
    %v235 = vadd.f32 0.0, %v234
    %236 = vmatmul.bf16.gmra.mxu0 %v164
    %v237 = vpop.f32.mrf.mxu0
    %v238 = vadd.f32 0.0, %v237
    %v239 = vpop.f32.mrf.mxu0
    %v240 = vadd.f32 0.0, %v239
    %241 = vmatmul.bf16.gmra.mxu0 %v165
    %v242 = vpop.f32.mrf.mxu0
    %v243 = vadd.f32 0.0, %v242
    %v244 = vpop.f32.mrf.mxu0
    %v245 = vadd.f32 0.0, %v244
    %246 = vmatmul.bf16.gmra.mxu0 %v166
    %v247 = vpop.f32.mrf.mxu0
    %v248 = vadd.f32 0.0, %v247
    %v249 = vpop.f32.mrf.mxu0
    %v250 = vadd.f32 0.0, %v249
    %251 = vmatmul.bf16.gmra.mxu0 %v167
    %v252 = vpop.f32.mrf.mxu0
    %v253 = vadd.f32 0.0, %v252
    %v254 = vpop.f32.mrf.mxu0
    %v255 = vadd.f32 0.0, %v254
    %256 = vmatmul.bf16.gmra.mxu0 %v168
    %v257 = vpop.f32.mrf.mxu0
    %v258 = vadd.f32 0.0, %v257
    %v259 = vpop.f32.mrf.mxu0
    %v260 = vadd.f32 0.0, %v259
    %261 = vmatmul.bf16.gmra.mxu0 %v169
    %v262 = vpop.f32.mrf.mxu0
    %v263 = vadd.f32 0.0, %v262
    %v264 = vpop.f32.mrf.mxu0
    %v265 = vadd.f32 0.0, %v264
    %266 = vdwg.mxu0
    %268 = vset.pattern.permute.xlu0 0
    %269 = vperm.xlu0 %268, %v90
    %v270 = vpop.permute.xlu0 %269
    %273 = vset.pattern.permute.xlu0 0
    %274 = vperm.xlu0 %273, %v91
    %v275 = vpop.permute.xlu0 %274
    %278 = vset.pattern.permute.xlu0 0
    %279 = vperm.xlu0 %278, %v92
    %v280 = vpop.permute.xlu0 %279
    %283 = vset.pattern.permute.xlu0 0
    %284 = vperm.xlu0 %283, %v93
    %v285 = vpop.permute.xlu0 %284
    %288 = vset.pattern.permute.xlu0 0
    %289 = vperm.xlu0 %288, %v94
    %v290 = vpop.permute.xlu0 %289
    %293 = vset.pattern.permute.xlu0 0
    %294 = vperm.xlu0 %293, %v95
    %v295 = vpop.permute.xlu0 %294
    %298 = vset.pattern.permute.xlu0 0
    %299 = vperm.xlu0 %298, %v96
    %v300 = vpop.permute.xlu0 %299
    %303 = vset.pattern.permute.xlu0 0
    %304 = vperm.xlu0 %303, %v97
    %v305 = vpop.permute.xlu0 %304
    %308 = vset.pattern.permute.xlu0 0
    %309 = vperm.xlu0 %308, %v98
    %v310 = vpop.permute.xlu0 %309
    %313 = vset.pattern.permute.xlu0 0
    %314 = vperm.xlu0 %313, %v99
    %v315 = vpop.permute.xlu0 %314
    %318 = vset.pattern.permute.xlu0 0
    %319 = vperm.xlu0 %318, %v100
    %v320 = vpop.permute.xlu0 %319
    %323 = vset.pattern.permute.xlu0 0
    %324 = vperm.xlu0 %323, %v101
    %v325 = vpop.permute.xlu0 %324
    %328 = vset.pattern.permute.xlu0 0
    %329 = vperm.xlu0 %328, %v102
    %v330 = vpop.permute.xlu0 %329
    %333 = vset.pattern.permute.xlu0 0
    %334 = vperm.xlu0 %333, %v103
    %v335 = vpop.permute.xlu0 %334
    %338 = vset.pattern.permute.xlu0 0
    %339 = vperm.xlu0 %338, %v104
    %v340 = vpop.permute.xlu0 %339
    %343 = vset.pattern.permute.xlu0 0
    %344 = vperm.xlu0 %343, %v105
    %v345 = vpop.permute.xlu0 %344
    %v347 = vmul.f32 %v228, %v270
    %v348 = vmul.f32 %v230, %v275
    %v349 = vmul.f32 %v233, %v280
    %v350 = vmul.f32 %v235, %v285
    %v351 = vmul.f32 %v238, %v290
    %v352 = vmul.f32 %v240, %v295
    %v353 = vmul.f32 %v243, %v300
    %v354 = vmul.f32 %v245, %v305
    %v355 = vmul.f32 %v248, %v310
    %v356 = vmul.f32 %v250, %v315
    %v357 = vmul.f32 %v253, %v320
    %v358 = vmul.f32 %v255, %v325
    %v359 = vmul.f32 %v258, %v330
    %v360 = vmul.f32 %v260, %v335
    %v361 = vmul.f32 %v263, %v340
    %v362 = vmul.f32 %v265, %v345
    %v363 = vpack.c.bf16 %v348, %v347
    %v364 = vpack.c.bf16 %v350, %v349
    %v365 = vpack.c.bf16 %v352, %v351
    %v366 = vpack.c.bf16 %v354, %v353
    %v367 = vpack.c.bf16 %v356, %v355
    %v368 = vpack.c.bf16 %v358, %v357
    %v369 = vpack.c.bf16 %v360, %v359
    %v370 = vpack.c.bf16 %v362, %v361
    %v371 = vld [vmem:[%s4] sm:$0xf]
    %v372 = vld [vmem:[%s4 + $0x4] sm:$0xf]
    %v373 = vld [vmem:[%s4 + $0x8] sm:$0xf]
    %v374 = vld [vmem:[%s4 + $0xc] sm:$0xf]
    %v375 = vld [vmem:[%s4 + $0x10] sm:$0xf]
    %v376 = vld [vmem:[%s4 + $0x14] sm:$0xf]
    %v377 = vld [vmem:[%s4 + $0x18] sm:$0xf]
    %v378 = vld [vmem:[%s4 + $0x1c] sm:$0xf]
    %v379 = vld [vmem:[%s4 + $0x20] sm:$0xf]
    %v380 = vld [vmem:[%s4 + $0x24] sm:$0xf]
    %v381 = vld [vmem:[%s4 + $0x28] sm:$0xf]
    %v382 = vld [vmem:[%s4 + $0x2c] sm:$0xf]
    %v383 = vld [vmem:[%s4 + $0x30] sm:$0xf]
    %v384 = vld [vmem:[%s4 + $0x34] sm:$0xf]
    %v385 = vld [vmem:[%s4 + $0x38] sm:$0xf]
    %v386 = vld [vmem:[%s4 + $0x3c] sm:$0xf]
    %v403 = vunpack.c.l.b16 %v371
    %v404 = vunpack.c.l.b16 %v372
    %v405 = vunpack.c.l.b16 %v373
    %v406 = vunpack.c.l.b16 %v374
    %v407 = vunpack.c.l.b16 %v375
    %v408 = vunpack.c.l.b16 %v376
    %v409 = vunpack.c.l.b16 %v377
    %v410 = vunpack.c.l.b16 %v378
    %v411 = vunpack.c.l.b16 %v379
    %v412 = vunpack.c.l.b16 %v380
    %v413 = vunpack.c.l.b16 %v381
    %v414 = vunpack.c.l.b16 %v382
    %v415 = vunpack.c.l.b16 %v383
    %v416 = vunpack.c.l.b16 %v384
    %v417 = vunpack.c.l.b16 %v385
    %v418 = vunpack.c.l.b16 %v386
    %v419 = vpack.c.b16 %v404, %v403
    %v420 = vpack.c.b16 %v406, %v405
    %v421 = vpack.c.b16 %v408, %v407
    %v422 = vpack.c.b16 %v410, %v409
    %v423 = vpack.c.b16 %v412, %v411
    %v424 = vpack.c.b16 %v414, %v413
    %v425 = vpack.c.b16 %v416, %v415
    %v426 = vpack.c.b16 %v418, %v417
    %435 = vmatpush.bf16.msra.mxu0 %v426
    %436 = vmatpush.bf16.msra.mxu0 %v425
    %437 = vmatpush.bf16.msra.mxu0 %v424
    %438 = vmatpush.bf16.msra.mxu0 %v423
    %439 = vmatpush.bf16.msra.mxu0 %v422
    %440 = vmatpush.bf16.msra.mxu0 %v421
    %441 = vmatpush.bf16.msra.mxu0 %v420
    %442 = vmatpush.bf16.msra.mxu0 %v419
    %443 = vmatmul.bf16.gmra.mxu0 %v363
    %v444 = vpop.f32.mrf.mxu0
    %v445 = vadd.f32 0.0, %v444
    %v446 = vpop.f32.mrf.mxu0
    %v447 = vadd.f32 0.0, %v446
    %448 = vmatmul.bf16.gmra.mxu0 %v364
    %v449 = vpop.f32.mrf.mxu0
    %v450 = vadd.f32 0.0, %v449
    %v451 = vpop.f32.mrf.mxu0
    %v452 = vadd.f32 0.0, %v451
    %453 = vmatmul.bf16.gmra.mxu0 %v365
    %v454 = vpop.f32.mrf.mxu0
    %v455 = vadd.f32 0.0, %v454
    %v456 = vpop.f32.mrf.mxu0
    %v457 = vadd.f32 0.0, %v456
    %458 = vmatmul.bf16.gmra.mxu0 %v366
    %v459 = vpop.f32.mrf.mxu0
    %v460 = vadd.f32 0.0, %v459
    %v461 = vpop.f32.mrf.mxu0
    %v462 = vadd.f32 0.0, %v461
    %463 = vmatmul.bf16.gmra.mxu0 %v367
    %v464 = vpop.f32.mrf.mxu0
    %v465 = vadd.f32 0.0, %v464
    %v466 = vpop.f32.mrf.mxu0
    %v467 = vadd.f32 0.0, %v466
    %468 = vmatmul.bf16.gmra.mxu0 %v368
    %v469 = vpop.f32.mrf.mxu0
    %v470 = vadd.f32 0.0, %v469
    %v471 = vpop.f32.mrf.mxu0
    %v472 = vadd.f32 0.0, %v471
    %473 = vmatmul.bf16.gmra.mxu0 %v369
    %v474 = vpop.f32.mrf.mxu0
    %v475 = vadd.f32 0.0, %v474
    %v476 = vpop.f32.mrf.mxu0
    %v477 = vadd.f32 0.0, %v476
    %478 = vmatmul.bf16.gmra.mxu0 %v370
    %v479 = vpop.f32.mrf.mxu0
    %v480 = vadd.f32 0.0, %v479
    %v481 = vpop.f32.mrf.mxu0
    %v482 = vadd.f32 0.0, %v481
    %483 = vdwg.mxu0
    %v484 = vpack.c.bf16 %v447, %v445
    %v485 = vpack.c.bf16 %v452, %v450
    %v486 = vpack.c.bf16 %v457, %v455
    %v487 = vpack.c.bf16 %v462, %v460
    %v488 = vpack.c.bf16 %v467, %v465
    %v489 = vpack.c.bf16 %v472, %v470
    %v490 = vpack.c.bf16 %v477, %v475
    %v491 = vpack.c.bf16 %v482, %v480
    %492 = vmatpush.bf16.msra.mxu0 %v491
    %493 = vmatpush.bf16.msra.mxu0 %v490
    %494 = vmatpush.bf16.msra.mxu0 %v489
    %495 = vmatpush.bf16.msra.mxu0 %v488
    %496 = vmatpush.bf16.msra.mxu0 %v487
    %497 = vmatpush.bf16.msra.mxu0 %v486
    %498 = vmatpush.bf16.msra.mxu0 %v485
    %499 = vmatpush.bf16.msra.mxu0 %v484
    %500 = vmatmul.bf16.gmra.mxu0 %v138
    %v501 = vpop.f32.mrf.mxu0
    %v502 = vadd.f32 0.0, %v501
    %v503 = vpop.f32.mrf.mxu0
    %v504 = vadd.f32 0.0, %v503
    %505 = vmatmul.bf16.gmra.mxu0 %v139
    %v506 = vpop.f32.mrf.mxu0
    %v507 = vadd.f32 0.0, %v506
    %v508 = vpop.f32.mrf.mxu0
    %v509 = vadd.f32 0.0, %v508
    %510 = vmatmul.bf16.gmra.mxu0 %v140
    %v511 = vpop.f32.mrf.mxu0
    %v512 = vadd.f32 0.0, %v511
    %v513 = vpop.f32.mrf.mxu0
    %v514 = vadd.f32 0.0, %v513
    %515 = vmatmul.bf16.gmra.mxu0 %v141
    %v516 = vpop.f32.mrf.mxu0
    %v517 = vadd.f32 0.0, %v516
    %v518 = vpop.f32.mrf.mxu0
    %v519 = vadd.f32 0.0, %v518
    %520 = vmatmul.bf16.gmra.mxu0 %v142
    %v521 = vpop.f32.mrf.mxu0
    %v522 = vadd.f32 0.0, %v521
    %v523 = vpop.f32.mrf.mxu0
    %v524 = vadd.f32 0.0, %v523
    %525 = vmatmul.bf16.gmra.mxu0 %v143
    %v526 = vpop.f32.mrf.mxu0
    %v527 = vadd.f32 0.0, %v526
    %v528 = vpop.f32.mrf.mxu0
    %v529 = vadd.f32 0.0, %v528
    %530 = vmatmul.bf16.gmra.mxu0 %v144
    %v531 = vpop.f32.mrf.mxu0
    %v532 = vadd.f32 0.0, %v531
    %v533 = vpop.f32.mrf.mxu0
    %v534 = vadd.f32 0.0, %v533
    %535 = vmatmul.bf16.gmra.mxu0 %v145
    %v536 = vpop.f32.mrf.mxu0
    %v537 = vadd.f32 0.0, %v536
    %v538 = vpop.f32.mrf.mxu0
    %v539 = vadd.f32 0.0, %v538
    %540 = vdwg.mxu0
    %542 = vset.pattern.permute.xlu0 0
    %543 = vperm.xlu0 %542, %v74
    %v544 = vpop.permute.xlu0 %543
    %547 = vset.pattern.permute.xlu0 0
    %548 = vperm.xlu0 %547, %v75
    %v549 = vpop.permute.xlu0 %548
    %552 = vset.pattern.permute.xlu0 0
    %553 = vperm.xlu0 %552, %v76
    %v554 = vpop.permute.xlu0 %553
    %557 = vset.pattern.permute.xlu0 0
    %558 = vperm.xlu0 %557, %v77
    %v559 = vpop.permute.xlu0 %558
    %562 = vset.pattern.permute.xlu0 0
    %563 = vperm.xlu0 %562, %v78
    %v564 = vpop.permute.xlu0 %563
    %567 = vset.pattern.permute.xlu0 0
    %568 = vperm.xlu0 %567, %v79
    %v569 = vpop.permute.xlu0 %568
    %572 = vset.pattern.permute.xlu0 0
    %573 = vperm.xlu0 %572, %v80
    %v574 = vpop.permute.xlu0 %573
    %577 = vset.pattern.permute.xlu0 0
    %578 = vperm.xlu0 %577, %v81
    %v579 = vpop.permute.xlu0 %578
    %582 = vset.pattern.permute.xlu0 0
    %583 = vperm.xlu0 %582, %v82
    %v584 = vpop.permute.xlu0 %583
    %587 = vset.pattern.permute.xlu0 0
    %588 = vperm.xlu0 %587, %v83
    %v589 = vpop.permute.xlu0 %588
    %592 = vset.pattern.permute.xlu0 0
    %593 = vperm.xlu0 %592, %v84
    %v594 = vpop.permute.xlu0 %593
    %597 = vset.pattern.permute.xlu0 0
    %598 = vperm.xlu0 %597, %v85
    %v599 = vpop.permute.xlu0 %598
    %602 = vset.pattern.permute.xlu0 0
    %603 = vperm.xlu0 %602, %v86
    %v604 = vpop.permute.xlu0 %603
    %607 = vset.pattern.permute.xlu0 0
    %608 = vperm.xlu0 %607, %v87
    %v609 = vpop.permute.xlu0 %608
    %612 = vset.pattern.permute.xlu0 0
    %613 = vperm.xlu0 %612, %v88
    %v614 = vpop.permute.xlu0 %613
    %617 = vset.pattern.permute.xlu0 0
    %618 = vperm.xlu0 %617, %v89
    %v619 = vpop.permute.xlu0 %618
    %v621 = vmul.f32 %v502, %v544
    %v622 = vmul.f32 %v504, %v549
    %v623 = vmul.f32 %v507, %v554
    %v624 = vmul.f32 %v509, %v559
    %v625 = vmul.f32 %v512, %v564
    %v626 = vmul.f32 %v514, %v569
    %v627 = vmul.f32 %v517, %v574
    %v628 = vmul.f32 %v519, %v579
    %v629 = vmul.f32 %v522, %v584
    %v630 = vmul.f32 %v524, %v589
    %v631 = vmul.f32 %v527, %v594
    %v632 = vmul.f32 %v529, %v599
    %v633 = vmul.f32 %v532, %v604
    %v634 = vmul.f32 %v534, %v609
    %v635 = vmul.f32 %v537, %v614
    %v636 = vmul.f32 %v539, %v619
    %v637 = vld [vmem:[%s5] sm:$0x1]
    %v639 = vperm.slane %v637, 0
    %v641 = vadd.f32 %v621, %v639
    %v642 = vadd.f32 %v622, %v639
    %v643 = vadd.f32 %v623, %v639
    %v644 = vadd.f32 %v624, %v639
    %v645 = vadd.f32 %v625, %v639
    %v646 = vadd.f32 %v626, %v639
    %v647 = vadd.f32 %v627, %v639
    %v648 = vadd.f32 %v628, %v639
    %v649 = vadd.f32 %v629, %v639
    %v650 = vadd.f32 %v630, %v639
    %v651 = vadd.f32 %v631, %v639
    %v652 = vadd.f32 %v632, %v639
    %v653 = vadd.f32 %v633, %v639
    %v654 = vadd.f32 %v634, %v639
    %v655 = vadd.f32 %v635, %v639
    %v656 = vadd.f32 %v636, %v639
    %v657 = vmax.f32 %v641, 0.0
    %v658 = vmax.f32 %v642, 0.0
    %v659 = vmax.f32 %v643, 0.0
    %v660 = vmax.f32 %v644, 0.0
    %v661 = vmax.f32 %v645, 0.0
    %v662 = vmax.f32 %v646, 0.0
    %v663 = vmax.f32 %v647, 0.0
    %v664 = vmax.f32 %v648, 0.0
    %v665 = vmax.f32 %v649, 0.0
    %v666 = vmax.f32 %v650, 0.0
    %v667 = vmax.f32 %v651, 0.0
    %v668 = vmax.f32 %v652, 0.0
    %v669 = vmax.f32 %v653, 0.0
    %v670 = vmax.f32 %v654, 0.0
    %v671 = vmax.f32 %v655, 0.0
    %v672 = vmax.f32 %v656, 0.0
    %v673 = vld [vmem:[%s6] sm:$0x1]
    %v674 = vld [vmem:[%s7] sm:$0x1]
    %675 = vadd.xlane.f32.xlu0 %v657
    %v676 = vpop.xlane.xlu0 %675
    %677 = vadd.xlane.f32.xlu0 %v658
    %v678 = vpop.xlane.xlu0 %677
    %679 = vadd.xlane.f32.xlu0 %v659
    %v680 = vpop.xlane.xlu0 %679
    %681 = vadd.xlane.f32.xlu0 %v660
    %v682 = vpop.xlane.xlu0 %681
    %683 = vadd.xlane.f32.xlu0 %v661
    %v684 = vpop.xlane.xlu0 %683
    %685 = vadd.xlane.f32.xlu0 %v662
    %v686 = vpop.xlane.xlu0 %685
    %687 = vadd.xlane.f32.xlu0 %v663
    %v688 = vpop.xlane.xlu0 %687
    %689 = vadd.xlane.f32.xlu0 %v664
    %v690 = vpop.xlane.xlu0 %689
    %691 = vadd.xlane.f32.xlu0 %v665
    %v692 = vpop.xlane.xlu0 %691
    %693 = vadd.xlane.f32.xlu0 %v666
    %v694 = vpop.xlane.xlu0 %693
    %695 = vadd.xlane.f32.xlu0 %v667
    %v696 = vpop.xlane.xlu0 %695
    %697 = vadd.xlane.f32.xlu0 %v668
    %v698 = vpop.xlane.xlu0 %697
    %699 = vadd.xlane.f32.xlu0 %v669
    %v700 = vpop.xlane.xlu0 %699
    %701 = vadd.xlane.f32.xlu0 %v670
    %v702 = vpop.xlane.xlu0 %701
    %703 = vadd.xlane.f32.xlu0 %v671
    %v704 = vpop.xlane.xlu0 %703
    %705 = vadd.xlane.f32.xlu0 %v672
    %v706 = vpop.xlane.xlu0 %705
    %v707 = vmul.f32 %v657, %v657
    %v708 = vmul.f32 %v658, %v658
    %v709 = vmul.f32 %v659, %v659
    %v710 = vmul.f32 %v660, %v660
    %v711 = vmul.f32 %v661, %v661
    %v712 = vmul.f32 %v662, %v662
    %v713 = vmul.f32 %v663, %v663
    %v714 = vmul.f32 %v664, %v664
    %v715 = vmul.f32 %v665, %v665
    %v716 = vmul.f32 %v666, %v666
    %v717 = vmul.f32 %v667, %v667
    %v718 = vmul.f32 %v668, %v668
    %v719 = vmul.f32 %v669, %v669
    %v720 = vmul.f32 %v670, %v670
    %v721 = vmul.f32 %v671, %v671
    %v722 = vmul.f32 %v672, %v672
    %723 = vadd.xlane.f32.xlu0 %v707
    %v724 = vpop.xlane.xlu0 %723
    %725 = vadd.xlane.f32.xlu0 %v708
    %v726 = vpop.xlane.xlu0 %725
    %727 = vadd.xlane.f32.xlu0 %v709
    %v728 = vpop.xlane.xlu0 %727
    %729 = vadd.xlane.f32.xlu0 %v710
    %v730 = vpop.xlane.xlu0 %729
    %731 = vadd.xlane.f32.xlu0 %v711
    %v732 = vpop.xlane.xlu0 %731
    %733 = vadd.xlane.f32.xlu0 %v712
    %v734 = vpop.xlane.xlu0 %733
    %735 = vadd.xlane.f32.xlu0 %v713
    %v736 = vpop.xlane.xlu0 %735
    %737 = vadd.xlane.f32.xlu0 %v714
    %v738 = vpop.xlane.xlu0 %737
    %739 = vadd.xlane.f32.xlu0 %v715
    %v740 = vpop.xlane.xlu0 %739
    %741 = vadd.xlane.f32.xlu0 %v716
    %v742 = vpop.xlane.xlu0 %741
    %743 = vadd.xlane.f32.xlu0 %v717
    %v744 = vpop.xlane.xlu0 %743
    %745 = vadd.xlane.f32.xlu0 %v718
    %v746 = vpop.xlane.xlu0 %745
    %747 = vadd.xlane.f32.xlu0 %v719
    %v748 = vpop.xlane.xlu0 %747
    %749 = vadd.xlane.f32.xlu0 %v720
    %v750 = vpop.xlane.xlu0 %749
    %751 = vadd.xlane.f32.xlu0 %v721
    %v752 = vpop.xlane.xlu0 %751
    %753 = vadd.xlane.f32.xlu0 %v722
    %v754 = vpop.xlane.xlu0 %753
    %v755 = vmul.f32 %v676, 0.015625
    %v756 = vmul.f32 %v678, 0.015625
    %v757 = vmul.f32 %v680, 0.015625
    %v758 = vmul.f32 %v682, 0.015625
    %v759 = vmul.f32 %v684, 0.015625
    %v760 = vmul.f32 %v686, 0.015625
    %v761 = vmul.f32 %v688, 0.015625
    %v762 = vmul.f32 %v690, 0.015625
    %v763 = vmul.f32 %v692, 0.015625
    %v764 = vmul.f32 %v694, 0.015625
    %v765 = vmul.f32 %v696, 0.015625
    %v766 = vmul.f32 %v698, 0.015625
    %v767 = vmul.f32 %v700, 0.015625
    %v768 = vmul.f32 %v702, 0.015625
    %v769 = vmul.f32 %v704, 0.015625
    %v770 = vmul.f32 %v706, 0.015625
    %v771 = vmul.f32 %v724, 0.015625
    %v772 = vmul.f32 %v726, 0.015625
    %v773 = vmul.f32 %v728, 0.015625
    %v774 = vmul.f32 %v730, 0.015625
    %v775 = vmul.f32 %v732, 0.015625
    %v776 = vmul.f32 %v734, 0.015625
    %v777 = vmul.f32 %v736, 0.015625
    %v778 = vmul.f32 %v738, 0.015625
    %v779 = vmul.f32 %v740, 0.015625
    %v780 = vmul.f32 %v742, 0.015625
    %v781 = vmul.f32 %v744, 0.015625
    %v782 = vmul.f32 %v746, 0.015625
    %v783 = vmul.f32 %v748, 0.015625
    %v784 = vmul.f32 %v750, 0.015625
    %v785 = vmul.f32 %v752, 0.015625
    %v786 = vmul.f32 %v754, 0.015625
    %v787 = vmul.f32 %v755, %v755
    %v788 = vmul.f32 %v756, %v756
    %v789 = vmul.f32 %v757, %v757
    %v790 = vmul.f32 %v758, %v758
    %v791 = vmul.f32 %v759, %v759
    %v792 = vmul.f32 %v760, %v760
    %v793 = vmul.f32 %v761, %v761
    %v794 = vmul.f32 %v762, %v762
    %v795 = vmul.f32 %v763, %v763
    %v796 = vmul.f32 %v764, %v764
    %v797 = vmul.f32 %v765, %v765
    %v798 = vmul.f32 %v766, %v766
    %v799 = vmul.f32 %v767, %v767
    %v800 = vmul.f32 %v768, %v768
    %v801 = vmul.f32 %v769, %v769
    %v802 = vmul.f32 %v770, %v770
    %v803 = vsub.f32 %v771, %v787
    %v804 = vsub.f32 %v772, %v788
    %v805 = vsub.f32 %v773, %v789
    %v806 = vsub.f32 %v774, %v790
    %v807 = vsub.f32 %v775, %v791
    %v808 = vsub.f32 %v776, %v792
    %v809 = vsub.f32 %v777, %v793
    %v810 = vsub.f32 %v778, %v794
    %v811 = vsub.f32 %v779, %v795
    %v812 = vsub.f32 %v780, %v796
    %v813 = vsub.f32 %v781, %v797
    %v814 = vsub.f32 %v782, %v798
    %v815 = vsub.f32 %v783, %v799
    %v816 = vsub.f32 %v784, %v800
    %v817 = vsub.f32 %v785, %v801
    %v818 = vsub.f32 %v786, %v802
    %v819 = vmax.f32 %v803, 0.0
    %v820 = vmax.f32 %v804, 0.0
    %v821 = vmax.f32 %v805, 0.0
    %v822 = vmax.f32 %v806, 0.0
    %v823 = vmax.f32 %v807, 0.0
    %v824 = vmax.f32 %v808, 0.0
    %v825 = vmax.f32 %v809, 0.0
    %v826 = vmax.f32 %v810, 0.0
    %v827 = vmax.f32 %v811, 0.0
    %v828 = vmax.f32 %v812, 0.0
    %v829 = vmax.f32 %v813, 0.0
    %v830 = vmax.f32 %v814, 0.0
    %v831 = vmax.f32 %v815, 0.0
    %v832 = vmax.f32 %v816, 0.0
    %v833 = vmax.f32 %v817, 0.0
    %v834 = vmax.f32 %v818, 0.0
    %v835 = vadd.f32 %v819, 1e-05
    %v836 = vadd.f32 %v820, 1e-05
    %v837 = vadd.f32 %v821, 1e-05
    %v838 = vadd.f32 %v822, 1e-05
    %v839 = vadd.f32 %v823, 1e-05
    %v840 = vadd.f32 %v824, 1e-05
    %v841 = vadd.f32 %v825, 1e-05
    %v842 = vadd.f32 %v826, 1e-05
    %v843 = vadd.f32 %v827, 1e-05
    %v844 = vadd.f32 %v828, 1e-05
    %v845 = vadd.f32 %v829, 1e-05
    %v846 = vadd.f32 %v830, 1e-05
    %v847 = vadd.f32 %v831, 1e-05
    %v848 = vadd.f32 %v832, 1e-05
    %v849 = vadd.f32 %v833, 1e-05
    %v850 = vadd.f32 %v834, 1e-05
    %v851 = vrsqrt.pop %v835
    %v852 = vmul.f32 %v851, %v835
    %v853 = vmul.f32 %v852, %v851
    %v854 = vmul.f32 0.5, %v853
    %v855 = vsub.f32 1.5, %v854
    %v856 = vmul.f32 %v851, %v855
    %vm857 = vweird.f32 %v835
    %vm858 = vweird.f32 %v851
    %vm859 = vmor %vm857, %vm858
    %v860 = vsel %vm859, %v851, %v856
    %v861 = vrsqrt.pop %v836
    %v862 = vmul.f32 %v861, %v836
    %v863 = vmul.f32 %v862, %v861
    %v864 = vmul.f32 0.5, %v863
    %v865 = vsub.f32 1.5, %v864
    %v866 = vmul.f32 %v861, %v865
    %vm867 = vweird.f32 %v836
    %vm868 = vweird.f32 %v861
    %vm869 = vmor %vm867, %vm868
    %v870 = vsel %vm869, %v861, %v866
    %v871 = vrsqrt.pop %v837
    %v872 = vmul.f32 %v871, %v837
    %v873 = vmul.f32 %v872, %v871
    %v874 = vmul.f32 0.5, %v873
    %v875 = vsub.f32 1.5, %v874
    %v876 = vmul.f32 %v871, %v875
    %vm877 = vweird.f32 %v837
    %vm878 = vweird.f32 %v871
    %vm879 = vmor %vm877, %vm878
    %v880 = vsel %vm879, %v871, %v876
    %v881 = vrsqrt.pop %v838
    %v882 = vmul.f32 %v881, %v838
    %v883 = vmul.f32 %v882, %v881
    %v884 = vmul.f32 0.5, %v883
    %v885 = vsub.f32 1.5, %v884
    %v886 = vmul.f32 %v881, %v885
    %vm887 = vweird.f32 %v838
    %vm888 = vweird.f32 %v881
    %vm889 = vmor %vm887, %vm888
    %v890 = vsel %vm889, %v881, %v886
    %v891 = vrsqrt.pop %v839
    %v892 = vmul.f32 %v891, %v839
    %v893 = vmul.f32 %v892, %v891
    %v894 = vmul.f32 0.5, %v893
    %v895 = vsub.f32 1.5, %v894
    %v896 = vmul.f32 %v891, %v895
    %vm897 = vweird.f32 %v839
    %vm898 = vweird.f32 %v891
    %vm899 = vmor %vm897, %vm898
    %v900 = vsel %vm899, %v891, %v896
    %v901 = vrsqrt.pop %v840
    %v902 = vmul.f32 %v901, %v840
    %v903 = vmul.f32 %v902, %v901
    %v904 = vmul.f32 0.5, %v903
    %v905 = vsub.f32 1.5, %v904
    %v906 = vmul.f32 %v901, %v905
    %vm907 = vweird.f32 %v840
    %vm908 = vweird.f32 %v901
    %vm909 = vmor %vm907, %vm908
    %v910 = vsel %vm909, %v901, %v906
    %v911 = vrsqrt.pop %v841
    %v912 = vmul.f32 %v911, %v841
    %v913 = vmul.f32 %v912, %v911
    %v914 = vmul.f32 0.5, %v913
    %v915 = vsub.f32 1.5, %v914
    %v916 = vmul.f32 %v911, %v915
    %vm917 = vweird.f32 %v841
    %vm918 = vweird.f32 %v911
    %vm919 = vmor %vm917, %vm918
    %v920 = vsel %vm919, %v911, %v916
    %v921 = vrsqrt.pop %v842
    %v922 = vmul.f32 %v921, %v842
    %v923 = vmul.f32 %v922, %v921
    %v924 = vmul.f32 0.5, %v923
    %v925 = vsub.f32 1.5, %v924
    %v926 = vmul.f32 %v921, %v925
    %vm927 = vweird.f32 %v842
    %vm928 = vweird.f32 %v921
    %vm929 = vmor %vm927, %vm928
    %v930 = vsel %vm929, %v921, %v926
    %v931 = vrsqrt.pop %v843
    %v932 = vmul.f32 %v931, %v843
    %v933 = vmul.f32 %v932, %v931
    %v934 = vmul.f32 0.5, %v933
    %v935 = vsub.f32 1.5, %v934
    %v936 = vmul.f32 %v931, %v935
    %vm937 = vweird.f32 %v843
    %vm938 = vweird.f32 %v931
    %vm939 = vmor %vm937, %vm938
    %v940 = vsel %vm939, %v931, %v936
    %v941 = vrsqrt.pop %v844
    %v942 = vmul.f32 %v941, %v844
    %v943 = vmul.f32 %v942, %v941
    %v944 = vmul.f32 0.5, %v943
    %v945 = vsub.f32 1.5, %v944
    %v946 = vmul.f32 %v941, %v945
    %vm947 = vweird.f32 %v844
    %vm948 = vweird.f32 %v941
    %vm949 = vmor %vm947, %vm948
    %v950 = vsel %vm949, %v941, %v946
    %v951 = vrsqrt.pop %v845
    %v952 = vmul.f32 %v951, %v845
    %v953 = vmul.f32 %v952, %v951
    %v954 = vmul.f32 0.5, %v953
    %v955 = vsub.f32 1.5, %v954
    %v956 = vmul.f32 %v951, %v955
    %vm957 = vweird.f32 %v845
    %vm958 = vweird.f32 %v951
    %vm959 = vmor %vm957, %vm958
    %v960 = vsel %vm959, %v951, %v956
    %v961 = vrsqrt.pop %v846
    %v962 = vmul.f32 %v961, %v846
    %v963 = vmul.f32 %v962, %v961
    %v964 = vmul.f32 0.5, %v963
    %v965 = vsub.f32 1.5, %v964
    %v966 = vmul.f32 %v961, %v965
    %vm967 = vweird.f32 %v846
    %vm968 = vweird.f32 %v961
    %vm969 = vmor %vm967, %vm968
    %v970 = vsel %vm969, %v961, %v966
    %v971 = vrsqrt.pop %v847
    %v972 = vmul.f32 %v971, %v847
    %v973 = vmul.f32 %v972, %v971
    %v974 = vmul.f32 0.5, %v973
    %v975 = vsub.f32 1.5, %v974
    %v976 = vmul.f32 %v971, %v975
    %vm977 = vweird.f32 %v847
    %vm978 = vweird.f32 %v971
    %vm979 = vmor %vm977, %vm978
    %v980 = vsel %vm979, %v971, %v976
    %v981 = vrsqrt.pop %v848
    %v982 = vmul.f32 %v981, %v848
    %v983 = vmul.f32 %v982, %v981
    %v984 = vmul.f32 0.5, %v983
    %v985 = vsub.f32 1.5, %v984
    %v986 = vmul.f32 %v981, %v985
    %vm987 = vweird.f32 %v848
    %vm988 = vweird.f32 %v981
    %vm989 = vmor %vm987, %vm988
    %v990 = vsel %vm989, %v981, %v986
    %v991 = vrsqrt.pop %v849
    %v992 = vmul.f32 %v991, %v849
    %v993 = vmul.f32 %v992, %v991
    %v994 = vmul.f32 0.5, %v993
    %v995 = vsub.f32 1.5, %v994
    %v996 = vmul.f32 %v991, %v995
    %vm997 = vweird.f32 %v849
    %vm998 = vweird.f32 %v991
    %vm999 = vmor %vm997, %vm998
    %v1000 = vsel %vm999, %v991, %v996
    %v1001 = vrsqrt.pop %v850
    %v1002 = vmul.f32 %v1001, %v850
    %v1003 = vmul.f32 %v1002, %v1001
    %v1004 = vmul.f32 0.5, %v1003
    %v1005 = vsub.f32 1.5, %v1004
    %v1006 = vmul.f32 %v1001, %v1005
    %vm1007 = vweird.f32 %v850
    %vm1008 = vweird.f32 %v1001
    %vm1009 = vmor %vm1007, %vm1008
    %v1010 = vsel %vm1009, %v1001, %v1006
    %v1011 = vsub.f32 %v657, %v755
    %v1012 = vsub.f32 %v658, %v756
    %v1013 = vsub.f32 %v659, %v757
    %v1014 = vsub.f32 %v660, %v758
    %v1015 = vsub.f32 %v661, %v759
    %v1016 = vsub.f32 %v662, %v760
    %v1017 = vsub.f32 %v663, %v761
    %v1018 = vsub.f32 %v664, %v762
    %v1019 = vsub.f32 %v665, %v763
    %v1020 = vsub.f32 %v666, %v764
    %v1021 = vsub.f32 %v667, %v765
    %v1022 = vsub.f32 %v668, %v766
    %v1023 = vsub.f32 %v669, %v767
    %v1024 = vsub.f32 %v670, %v768
    %v1025 = vsub.f32 %v671, %v769
    %v1026 = vsub.f32 %v672, %v770
    %v1028 = vperm.slane %v673, 0
    %v1030 = vmul.f32 %v1028, %v860
    %v1031 = vmul.f32 %v1028, %v870
    %v1032 = vmul.f32 %v1028, %v880
    %v1033 = vmul.f32 %v1028, %v890
    %v1034 = vmul.f32 %v1028, %v900
    %v1035 = vmul.f32 %v1028, %v910
    %v1036 = vmul.f32 %v1028, %v920
    %v1037 = vmul.f32 %v1028, %v930
    %v1038 = vmul.f32 %v1028, %v940
    %v1039 = vmul.f32 %v1028, %v950
    %v1040 = vmul.f32 %v1028, %v960
    %v1041 = vmul.f32 %v1028, %v970
    %v1042 = vmul.f32 %v1028, %v980
    %v1043 = vmul.f32 %v1028, %v990
    %v1044 = vmul.f32 %v1028, %v1000
    %v1045 = vmul.f32 %v1028, %v1010
    %v1046 = vmul.f32 %v1011, %v1030
    %v1047 = vmul.f32 %v1012, %v1031
    %v1048 = vmul.f32 %v1013, %v1032
    %v1049 = vmul.f32 %v1014, %v1033
    %v1050 = vmul.f32 %v1015, %v1034
    %v1051 = vmul.f32 %v1016, %v1035
    %v1052 = vmul.f32 %v1017, %v1036
    %v1053 = vmul.f32 %v1018, %v1037
    %v1054 = vmul.f32 %v1019, %v1038
    %v1055 = vmul.f32 %v1020, %v1039
    %v1056 = vmul.f32 %v1021, %v1040
    %v1057 = vmul.f32 %v1022, %v1041
    %v1058 = vmul.f32 %v1023, %v1042
    %v1059 = vmul.f32 %v1024, %v1043
    %v1060 = vmul.f32 %v1025, %v1044
    %v1061 = vmul.f32 %v1026, %v1045
    %v1063 = vperm.slane %v674, 0
    %v1065 = vadd.f32 %v1046, %v1063
    %v1066 = vadd.f32 %v1047, %v1063
    %v1067 = vadd.f32 %v1048, %v1063
    %v1068 = vadd.f32 %v1049, %v1063
    %v1069 = vadd.f32 %v1050, %v1063
    %v1070 = vadd.f32 %v1051, %v1063
    %v1071 = vadd.f32 %v1052, %v1063
    %v1072 = vadd.f32 %v1053, %v1063
    %v1073 = vadd.f32 %v1054, %v1063
    %v1074 = vadd.f32 %v1055, %v1063
    %v1075 = vadd.f32 %v1056, %v1063
    %v1076 = vadd.f32 %v1057, %v1063
    %v1077 = vadd.f32 %v1058, %v1063
    %v1078 = vadd.f32 %v1059, %v1063
    %v1079 = vadd.f32 %v1060, %v1063
    %v1080 = vadd.f32 %v1061, %v1063
    %v1081 = vpack.c.bf16 %v1066, %v1065
    %v1082 = vpack.c.bf16 %v1068, %v1067
    %v1083 = vpack.c.bf16 %v1070, %v1069
    %v1084 = vpack.c.bf16 %v1072, %v1071
    %v1085 = vpack.c.bf16 %v1074, %v1073
    %v1086 = vpack.c.bf16 %v1076, %v1075
    %v1087 = vpack.c.bf16 %v1078, %v1077
    %v1088 = vpack.c.bf16 %v1080, %v1079
    %v1089 = vld [vmem:[%s8] sm:$0xf]
    %v1090 = vld [vmem:[%s8 + $0x4] sm:$0xf]
    %v1091 = vld [vmem:[%s8 + $0x8] sm:$0xf]
    %v1092 = vld [vmem:[%s8 + $0xc] sm:$0xf]
    %v1093 = vld [vmem:[%s8 + $0x10] sm:$0xf]
    %v1094 = vld [vmem:[%s8 + $0x14] sm:$0xf]
    %v1095 = vld [vmem:[%s8 + $0x18] sm:$0xf]
    %v1096 = vld [vmem:[%s8 + $0x1c] sm:$0xf]
    %v1097 = vld [vmem:[%s8 + $0x20] sm:$0xf]
    %v1098 = vld [vmem:[%s8 + $0x24] sm:$0xf]
    %v1099 = vld [vmem:[%s8 + $0x28] sm:$0xf]
    %v1100 = vld [vmem:[%s8 + $0x2c] sm:$0xf]
    %v1101 = vld [vmem:[%s8 + $0x30] sm:$0xf]
    %v1102 = vld [vmem:[%s8 + $0x34] sm:$0xf]
    %v1103 = vld [vmem:[%s8 + $0x38] sm:$0xf]
    %v1104 = vld [vmem:[%s8 + $0x3c] sm:$0xf]
    %v1121 = vunpack.c.l.b16 %v1089
    %v1122 = vunpack.c.l.b16 %v1090
    %v1123 = vunpack.c.l.b16 %v1091
    %v1124 = vunpack.c.l.b16 %v1092
    %v1125 = vunpack.c.l.b16 %v1093
    %v1126 = vunpack.c.l.b16 %v1094
    %v1127 = vunpack.c.l.b16 %v1095
    %v1128 = vunpack.c.l.b16 %v1096
    %v1129 = vunpack.c.l.b16 %v1097
    %v1130 = vunpack.c.l.b16 %v1098
    %v1131 = vunpack.c.l.b16 %v1099
    %v1132 = vunpack.c.l.b16 %v1100
    %v1133 = vunpack.c.l.b16 %v1101
    %v1134 = vunpack.c.l.b16 %v1102
    %v1135 = vunpack.c.l.b16 %v1103
    %v1136 = vunpack.c.l.b16 %v1104
    %v1137 = vpack.c.b16 %v1122, %v1121
    %v1138 = vpack.c.b16 %v1124, %v1123
    %v1139 = vpack.c.b16 %v1126, %v1125
    %v1140 = vpack.c.b16 %v1128, %v1127
    %v1141 = vpack.c.b16 %v1130, %v1129
    %v1142 = vpack.c.b16 %v1132, %v1131
    %v1143 = vpack.c.b16 %v1134, %v1133
    %v1144 = vpack.c.b16 %v1136, %v1135
    %1153 = vmatpush.bf16.msra.mxu0 %v1144
    %1154 = vmatpush.bf16.msra.mxu0 %v1143
    %1155 = vmatpush.bf16.msra.mxu0 %v1142
    %1156 = vmatpush.bf16.msra.mxu0 %v1141
    %1157 = vmatpush.bf16.msra.mxu0 %v1140
    %1158 = vmatpush.bf16.msra.mxu0 %v1139
    %1159 = vmatpush.bf16.msra.mxu0 %v1138
    %1160 = vmatpush.bf16.msra.mxu0 %v1137
    %1161 = vmatmul.bf16.gmra.mxu0 %v1081
    %v1162 = vpop.f32.mrf.mxu0
    %v1163 = vadd.f32 0.0, %v1162
    %v1164 = vpop.f32.mrf.mxu0
    %v1165 = vadd.f32 0.0, %v1164
    %1166 = vmatmul.bf16.gmra.mxu0 %v1082
    %v1167 = vpop.f32.mrf.mxu0
    %v1168 = vadd.f32 0.0, %v1167
    %v1169 = vpop.f32.mrf.mxu0
    %v1170 = vadd.f32 0.0, %v1169
    %1171 = vmatmul.bf16.gmra.mxu0 %v1083
    %v1172 = vpop.f32.mrf.mxu0
    %v1173 = vadd.f32 0.0, %v1172
    %v1174 = vpop.f32.mrf.mxu0
    %v1175 = vadd.f32 0.0, %v1174
    %1176 = vmatmul.bf16.gmra.mxu0 %v1084
    %v1177 = vpop.f32.mrf.mxu0
    %v1178 = vadd.f32 0.0, %v1177
    %v1179 = vpop.f32.mrf.mxu0
    %v1180 = vadd.f32 0.0, %v1179
    %1181 = vmatmul.bf16.gmra.mxu0 %v1085
    %v1182 = vpop.f32.mrf.mxu0
    %v1183 = vadd.f32 0.0, %v1182
    %v1184 = vpop.f32.mrf.mxu0
    %v1185 = vadd.f32 0.0, %v1184
    %1186 = vmatmul.bf16.gmra.mxu0 %v1086
    %v1187 = vpop.f32.mrf.mxu0
    %v1188 = vadd.f32 0.0, %v1187
    %v1189 = vpop.f32.mrf.mxu0
    %v1190 = vadd.f32 0.0, %v1189
    %1191 = vmatmul.bf16.gmra.mxu0 %v1087
    %v1192 = vpop.f32.mrf.mxu0
    %v1193 = vadd.f32 0.0, %v1192
    %v1194 = vpop.f32.mrf.mxu0
    %v1195 = vadd.f32 0.0, %v1194
    %1196 = vmatmul.bf16.gmra.mxu0 %v1088
    %v1197 = vpop.f32.mrf.mxu0
    %v1198 = vadd.f32 0.0, %v1197
    %v1199 = vpop.f32.mrf.mxu0
    %v1200 = vadd.f32 0.0, %v1199
    %1201 = vdwg.mxu0
    %v1202 = vpack.c.bf16 %v1165, %v1163
    %v1203 = vpack.c.bf16 %v1170, %v1168
    %v1204 = vpack.c.bf16 %v1175, %v1173
    %v1205 = vpack.c.bf16 %v1180, %v1178
    %v1206 = vpack.c.bf16 %v1185, %v1183
    %v1207 = vpack.c.bf16 %v1190, %v1188
    %v1208 = vpack.c.bf16 %v1195, %v1193
    %v1209 = vpack.c.bf16 %v1200, %v1198
    %1210 = vmatpush.bf16.msra.mxu0 %v1209
    %1211 = vmatpush.bf16.msra.mxu0 %v1208
    %1212 = vmatpush.bf16.msra.mxu0 %v1207
    %1213 = vmatpush.bf16.msra.mxu0 %v1206
    %1214 = vmatpush.bf16.msra.mxu0 %v1205
    %1215 = vmatpush.bf16.msra.mxu0 %v1204
    %1216 = vmatpush.bf16.msra.mxu0 %v1203
    %1217 = vmatpush.bf16.msra.mxu0 %v1202
    %1218 = vmatmul.bf16.gmra.mxu0 %v162
    %v1219 = vpop.f32.mrf.mxu0
    %v1220 = vadd.f32 0.0, %v1219
    %v1221 = vpop.f32.mrf.mxu0
    %v1222 = vadd.f32 0.0, %v1221
    %1223 = vmatmul.bf16.gmra.mxu0 %v163
    %v1224 = vpop.f32.mrf.mxu0
    %v1225 = vadd.f32 0.0, %v1224
    %v1226 = vpop.f32.mrf.mxu0
    %v1227 = vadd.f32 0.0, %v1226
    %1228 = vmatmul.bf16.gmra.mxu0 %v164
    %v1229 = vpop.f32.mrf.mxu0
    %v1230 = vadd.f32 0.0, %v1229
    %v1231 = vpop.f32.mrf.mxu0
    %v1232 = vadd.f32 0.0, %v1231
    %1233 = vmatmul.bf16.gmra.mxu0 %v165
    %v1234 = vpop.f32.mrf.mxu0
    %v1235 = vadd.f32 0.0, %v1234
    %v1236 = vpop.f32.mrf.mxu0
    %v1237 = vadd.f32 0.0, %v1236
    %1238 = vmatmul.bf16.gmra.mxu0 %v166
    %v1239 = vpop.f32.mrf.mxu0
    %v1240 = vadd.f32 0.0, %v1239
    %v1241 = vpop.f32.mrf.mxu0
    %v1242 = vadd.f32 0.0, %v1241
    %1243 = vmatmul.bf16.gmra.mxu0 %v167
    %v1244 = vpop.f32.mrf.mxu0
    %v1245 = vadd.f32 0.0, %v1244
    %v1246 = vpop.f32.mrf.mxu0
    %v1247 = vadd.f32 0.0, %v1246
    %1248 = vmatmul.bf16.gmra.mxu0 %v168
    %v1249 = vpop.f32.mrf.mxu0
    %v1250 = vadd.f32 0.0, %v1249
    %v1251 = vpop.f32.mrf.mxu0
    %v1252 = vadd.f32 0.0, %v1251
    %1253 = vmatmul.bf16.gmra.mxu0 %v169
    %v1254 = vpop.f32.mrf.mxu0
    %v1255 = vadd.f32 0.0, %v1254
    %v1256 = vpop.f32.mrf.mxu0
    %v1257 = vadd.f32 0.0, %v1256
    %1258 = vdwg.mxu0
    %v1259 = vmul.f32 %v1220, %v270
    %v1260 = vmul.f32 %v1222, %v275
    %v1261 = vmul.f32 %v1225, %v280
    %v1262 = vmul.f32 %v1227, %v285
    %v1263 = vmul.f32 %v1230, %v290
    %v1264 = vmul.f32 %v1232, %v295
    %v1265 = vmul.f32 %v1235, %v300
    %v1266 = vmul.f32 %v1237, %v305
    %v1267 = vmul.f32 %v1240, %v310
    %v1268 = vmul.f32 %v1242, %v315
    %v1269 = vmul.f32 %v1245, %v320
    %v1270 = vmul.f32 %v1247, %v325
    %v1271 = vmul.f32 %v1250, %v330
    %v1272 = vmul.f32 %v1252, %v335
    %v1273 = vmul.f32 %v1255, %v340
    %v1274 = vmul.f32 %v1257, %v345
    %v1275 = vpack.c.bf16 %v1260, %v1259
    %v1276 = vpack.c.bf16 %v1262, %v1261
    %v1277 = vpack.c.bf16 %v1264, %v1263
    %v1278 = vpack.c.bf16 %v1266, %v1265
    %v1279 = vpack.c.bf16 %v1268, %v1267
    %v1280 = vpack.c.bf16 %v1270, %v1269
    %v1281 = vpack.c.bf16 %v1272, %v1271
    %v1282 = vpack.c.bf16 %v1274, %v1273
    %1283 = vmatpush.bf16.msra.mxu0 %v1282
    %1284 = vmatpush.bf16.msra.mxu0 %v1281
    %1285 = vmatpush.bf16.msra.mxu0 %v1280
    %1286 = vmatpush.bf16.msra.mxu0 %v1279
    %1287 = vmatpush.bf16.msra.mxu0 %v1278
    %1288 = vmatpush.bf16.msra.mxu0 %v1277
    %1289 = vmatpush.bf16.msra.mxu0 %v1276
    %1290 = vmatpush.bf16.msra.mxu0 %v1275
    %1291 = vmatmul.bf16.gmra.mxu0 %v138
    %v1292 = vpop.f32.mrf.mxu0
    %v1293 = vadd.f32 0.0, %v1292
    %v1294 = vpop.f32.mrf.mxu0
    %v1295 = vadd.f32 0.0, %v1294
    %1296 = vmatmul.bf16.gmra.mxu0 %v139
    %v1297 = vpop.f32.mrf.mxu0
    %v1298 = vadd.f32 0.0, %v1297
    %v1299 = vpop.f32.mrf.mxu0
    %v1300 = vadd.f32 0.0, %v1299
    %1301 = vmatmul.bf16.gmra.mxu0 %v140
    %v1302 = vpop.f32.mrf.mxu0
    %v1303 = vadd.f32 0.0, %v1302
    %v1304 = vpop.f32.mrf.mxu0
    %v1305 = vadd.f32 0.0, %v1304
    %1306 = vmatmul.bf16.gmra.mxu0 %v141
    %v1307 = vpop.f32.mrf.mxu0
    %v1308 = vadd.f32 0.0, %v1307
    %v1309 = vpop.f32.mrf.mxu0
    %v1310 = vadd.f32 0.0, %v1309
    %1311 = vmatmul.bf16.gmra.mxu0 %v142
    %v1312 = vpop.f32.mrf.mxu0
    %v1313 = vadd.f32 0.0, %v1312
    %v1314 = vpop.f32.mrf.mxu0
    %v1315 = vadd.f32 0.0, %v1314
    %1316 = vmatmul.bf16.gmra.mxu0 %v143
    %v1317 = vpop.f32.mrf.mxu0
    %v1318 = vadd.f32 0.0, %v1317
    %v1319 = vpop.f32.mrf.mxu0
    %v1320 = vadd.f32 0.0, %v1319
    %1321 = vmatmul.bf16.gmra.mxu0 %v144
    %v1322 = vpop.f32.mrf.mxu0
    %v1323 = vadd.f32 0.0, %v1322
    %v1324 = vpop.f32.mrf.mxu0
    %v1325 = vadd.f32 0.0, %v1324
    %1326 = vmatmul.bf16.gmra.mxu0 %v145
    %v1327 = vpop.f32.mrf.mxu0
    %v1328 = vadd.f32 0.0, %v1327
    %v1329 = vpop.f32.mrf.mxu0
    %v1330 = vadd.f32 0.0, %v1329
    %1331 = vdwg.mxu0
    %v1332 = vmul.f32 %v1293, %v544
    %v1333 = vmul.f32 %v1295, %v549
    %v1334 = vmul.f32 %v1298, %v554
    %v1335 = vmul.f32 %v1300, %v559
    %v1336 = vmul.f32 %v1303, %v564
    %v1337 = vmul.f32 %v1305, %v569
    %v1338 = vmul.f32 %v1308, %v574
    %v1339 = vmul.f32 %v1310, %v579
    %v1340 = vmul.f32 %v1313, %v584
    %v1341 = vmul.f32 %v1315, %v589
    %v1342 = vmul.f32 %v1318, %v594
    %v1343 = vmul.f32 %v1320, %v599
    %v1344 = vmul.f32 %v1323, %v604
    %v1345 = vmul.f32 %v1325, %v609
    %v1346 = vmul.f32 %v1328, %v614
    %v1347 = vmul.f32 %v1330, %v619
    %v1348 = vld [vmem:[%s9] sm:$0x1]
    %v1350 = vperm.slane %v1348, 0
    %v1352 = vadd.f32 %v1332, %v1350
    %v1353 = vadd.f32 %v1333, %v1350
    %v1354 = vadd.f32 %v1334, %v1350
    %v1355 = vadd.f32 %v1335, %v1350
    %v1356 = vadd.f32 %v1336, %v1350
    %v1357 = vadd.f32 %v1337, %v1350
    %v1358 = vadd.f32 %v1338, %v1350
    %v1359 = vadd.f32 %v1339, %v1350
    %v1360 = vadd.f32 %v1340, %v1350
    %v1361 = vadd.f32 %v1341, %v1350
    %v1362 = vadd.f32 %v1342, %v1350
    %v1363 = vadd.f32 %v1343, %v1350
    %v1364 = vadd.f32 %v1344, %v1350
    %v1365 = vadd.f32 %v1345, %v1350
    %v1366 = vadd.f32 %v1346, %v1350
    %v1367 = vadd.f32 %v1347, %v1350
    %v1368 = vmax.f32 %v1352, 0.0
    %v1369 = vmax.f32 %v1353, 0.0
    %v1370 = vmax.f32 %v1354, 0.0
    %v1371 = vmax.f32 %v1355, 0.0
    %v1372 = vmax.f32 %v1356, 0.0
    %v1373 = vmax.f32 %v1357, 0.0
    %v1374 = vmax.f32 %v1358, 0.0
    %v1375 = vmax.f32 %v1359, 0.0
    %v1376 = vmax.f32 %v1360, 0.0
    %v1377 = vmax.f32 %v1361, 0.0
    %v1378 = vmax.f32 %v1362, 0.0
    %v1379 = vmax.f32 %v1363, 0.0
    %v1380 = vmax.f32 %v1364, 0.0
    %v1381 = vmax.f32 %v1365, 0.0
    %v1382 = vmax.f32 %v1366, 0.0
    %v1383 = vmax.f32 %v1367, 0.0
    %v1384 = vld [vmem:[%s10] sm:$0x1]
    %v1385 = vld [vmem:[%s11] sm:$0x1]
    %1386 = vadd.xlane.f32.xlu0 %v1368
    %v1387 = vpop.xlane.xlu0 %1386
    %1388 = vadd.xlane.f32.xlu0 %v1369
    %v1389 = vpop.xlane.xlu0 %1388
    %1390 = vadd.xlane.f32.xlu0 %v1370
    %v1391 = vpop.xlane.xlu0 %1390
    %1392 = vadd.xlane.f32.xlu0 %v1371
    %v1393 = vpop.xlane.xlu0 %1392
    %1394 = vadd.xlane.f32.xlu0 %v1372
    %v1395 = vpop.xlane.xlu0 %1394
    %1396 = vadd.xlane.f32.xlu0 %v1373
    %v1397 = vpop.xlane.xlu0 %1396
    %1398 = vadd.xlane.f32.xlu0 %v1374
    %v1399 = vpop.xlane.xlu0 %1398
    %1400 = vadd.xlane.f32.xlu0 %v1375
    %v1401 = vpop.xlane.xlu0 %1400
    %1402 = vadd.xlane.f32.xlu0 %v1376
    %v1403 = vpop.xlane.xlu0 %1402
    %1404 = vadd.xlane.f32.xlu0 %v1377
    %v1405 = vpop.xlane.xlu0 %1404
    %1406 = vadd.xlane.f32.xlu0 %v1378
    %v1407 = vpop.xlane.xlu0 %1406
    %1408 = vadd.xlane.f32.xlu0 %v1379
    %v1409 = vpop.xlane.xlu0 %1408
    %1410 = vadd.xlane.f32.xlu0 %v1380
    %v1411 = vpop.xlane.xlu0 %1410
    %1412 = vadd.xlane.f32.xlu0 %v1381
    %v1413 = vpop.xlane.xlu0 %1412
    %1414 = vadd.xlane.f32.xlu0 %v1382
    %v1415 = vpop.xlane.xlu0 %1414
    %1416 = vadd.xlane.f32.xlu0 %v1383
    %v1417 = vpop.xlane.xlu0 %1416
    %v1418 = vmul.f32 %v1368, %v1368
    %v1419 = vmul.f32 %v1369, %v1369
    %v1420 = vmul.f32 %v1370, %v1370
    %v1421 = vmul.f32 %v1371, %v1371
    %v1422 = vmul.f32 %v1372, %v1372
    %v1423 = vmul.f32 %v1373, %v1373
    %v1424 = vmul.f32 %v1374, %v1374
    %v1425 = vmul.f32 %v1375, %v1375
    %v1426 = vmul.f32 %v1376, %v1376
    %v1427 = vmul.f32 %v1377, %v1377
    %v1428 = vmul.f32 %v1378, %v1378
    %v1429 = vmul.f32 %v1379, %v1379
    %v1430 = vmul.f32 %v1380, %v1380
    %v1431 = vmul.f32 %v1381, %v1381
    %v1432 = vmul.f32 %v1382, %v1382
    %v1433 = vmul.f32 %v1383, %v1383
    %1434 = vadd.xlane.f32.xlu0 %v1418
    %v1435 = vpop.xlane.xlu0 %1434
    %1436 = vadd.xlane.f32.xlu0 %v1419
    %v1437 = vpop.xlane.xlu0 %1436
    %1438 = vadd.xlane.f32.xlu0 %v1420
    %v1439 = vpop.xlane.xlu0 %1438
    %1440 = vadd.xlane.f32.xlu0 %v1421
    %v1441 = vpop.xlane.xlu0 %1440
    %1442 = vadd.xlane.f32.xlu0 %v1422
    %v1443 = vpop.xlane.xlu0 %1442
    %1444 = vadd.xlane.f32.xlu0 %v1423
    %v1445 = vpop.xlane.xlu0 %1444
    %1446 = vadd.xlane.f32.xlu0 %v1424
    %v1447 = vpop.xlane.xlu0 %1446
    %1448 = vadd.xlane.f32.xlu0 %v1425
    %v1449 = vpop.xlane.xlu0 %1448
    %1450 = vadd.xlane.f32.xlu0 %v1426
    %v1451 = vpop.xlane.xlu0 %1450
    %1452 = vadd.xlane.f32.xlu0 %v1427
    %v1453 = vpop.xlane.xlu0 %1452
    %1454 = vadd.xlane.f32.xlu0 %v1428
    %v1455 = vpop.xlane.xlu0 %1454
    %1456 = vadd.xlane.f32.xlu0 %v1429
    %v1457 = vpop.xlane.xlu0 %1456
    %1458 = vadd.xlane.f32.xlu0 %v1430
    %v1459 = vpop.xlane.xlu0 %1458
    %1460 = vadd.xlane.f32.xlu0 %v1431
    %v1461 = vpop.xlane.xlu0 %1460
    %1462 = vadd.xlane.f32.xlu0 %v1432
    %v1463 = vpop.xlane.xlu0 %1462
    %1464 = vadd.xlane.f32.xlu0 %v1433
    %v1465 = vpop.xlane.xlu0 %1464
    %v1466 = vmul.f32 %v1387, 0.03125
    %v1467 = vmul.f32 %v1389, 0.03125
    %v1468 = vmul.f32 %v1391, 0.03125
    %v1469 = vmul.f32 %v1393, 0.03125
    %v1470 = vmul.f32 %v1395, 0.03125
    %v1471 = vmul.f32 %v1397, 0.03125
    %v1472 = vmul.f32 %v1399, 0.03125
    %v1473 = vmul.f32 %v1401, 0.03125
    %v1474 = vmul.f32 %v1403, 0.03125
    %v1475 = vmul.f32 %v1405, 0.03125
    %v1476 = vmul.f32 %v1407, 0.03125
    %v1477 = vmul.f32 %v1409, 0.03125
    %v1478 = vmul.f32 %v1411, 0.03125
    %v1479 = vmul.f32 %v1413, 0.03125
    %v1480 = vmul.f32 %v1415, 0.03125
    %v1481 = vmul.f32 %v1417, 0.03125
    %v1482 = vmul.f32 %v1435, 0.03125
    %v1483 = vmul.f32 %v1437, 0.03125
    %v1484 = vmul.f32 %v1439, 0.03125
    %v1485 = vmul.f32 %v1441, 0.03125
    %v1486 = vmul.f32 %v1443, 0.03125
    %v1487 = vmul.f32 %v1445, 0.03125
    %v1488 = vmul.f32 %v1447, 0.03125
    %v1489 = vmul.f32 %v1449, 0.03125
    %v1490 = vmul.f32 %v1451, 0.03125
    %v1491 = vmul.f32 %v1453, 0.03125
    %v1492 = vmul.f32 %v1455, 0.03125
    %v1493 = vmul.f32 %v1457, 0.03125
    %v1494 = vmul.f32 %v1459, 0.03125
    %v1495 = vmul.f32 %v1461, 0.03125
    %v1496 = vmul.f32 %v1463, 0.03125
    %v1497 = vmul.f32 %v1465, 0.03125
    %v1498 = vmul.f32 %v1466, %v1466
    %v1499 = vmul.f32 %v1467, %v1467
    %v1500 = vmul.f32 %v1468, %v1468
    %v1501 = vmul.f32 %v1469, %v1469
    %v1502 = vmul.f32 %v1470, %v1470
    %v1503 = vmul.f32 %v1471, %v1471
    %v1504 = vmul.f32 %v1472, %v1472
    %v1505 = vmul.f32 %v1473, %v1473
    %v1506 = vmul.f32 %v1474, %v1474
    %v1507 = vmul.f32 %v1475, %v1475
    %v1508 = vmul.f32 %v1476, %v1476
    %v1509 = vmul.f32 %v1477, %v1477
    %v1510 = vmul.f32 %v1478, %v1478
    %v1511 = vmul.f32 %v1479, %v1479
    %v1512 = vmul.f32 %v1480, %v1480
    %v1513 = vmul.f32 %v1481, %v1481
    %v1514 = vsub.f32 %v1482, %v1498
    %v1515 = vsub.f32 %v1483, %v1499
    %v1516 = vsub.f32 %v1484, %v1500
    %v1517 = vsub.f32 %v1485, %v1501
    %v1518 = vsub.f32 %v1486, %v1502
    %v1519 = vsub.f32 %v1487, %v1503
    %v1520 = vsub.f32 %v1488, %v1504
    %v1521 = vsub.f32 %v1489, %v1505
    %v1522 = vsub.f32 %v1490, %v1506
    %v1523 = vsub.f32 %v1491, %v1507
    %v1524 = vsub.f32 %v1492, %v1508
    %v1525 = vsub.f32 %v1493, %v1509
    %v1526 = vsub.f32 %v1494, %v1510
    %v1527 = vsub.f32 %v1495, %v1511
    %v1528 = vsub.f32 %v1496, %v1512
    %v1529 = vsub.f32 %v1497, %v1513
    %v1530 = vmax.f32 %v1514, 0.0
    %v1531 = vmax.f32 %v1515, 0.0
    %v1532 = vmax.f32 %v1516, 0.0
    %v1533 = vmax.f32 %v1517, 0.0
    %v1534 = vmax.f32 %v1518, 0.0
    %v1535 = vmax.f32 %v1519, 0.0
    %v1536 = vmax.f32 %v1520, 0.0
    %v1537 = vmax.f32 %v1521, 0.0
    %v1538 = vmax.f32 %v1522, 0.0
    %v1539 = vmax.f32 %v1523, 0.0
    %v1540 = vmax.f32 %v1524, 0.0
    %v1541 = vmax.f32 %v1525, 0.0
    %v1542 = vmax.f32 %v1526, 0.0
    %v1543 = vmax.f32 %v1527, 0.0
    %v1544 = vmax.f32 %v1528, 0.0
    %v1545 = vmax.f32 %v1529, 0.0
    %v1546 = vadd.f32 %v1530, 1e-05
    %v1547 = vadd.f32 %v1531, 1e-05
    %v1548 = vadd.f32 %v1532, 1e-05
    %v1549 = vadd.f32 %v1533, 1e-05
    %v1550 = vadd.f32 %v1534, 1e-05
    %v1551 = vadd.f32 %v1535, 1e-05
    %v1552 = vadd.f32 %v1536, 1e-05
    %v1553 = vadd.f32 %v1537, 1e-05
    %v1554 = vadd.f32 %v1538, 1e-05
    %v1555 = vadd.f32 %v1539, 1e-05
    %v1556 = vadd.f32 %v1540, 1e-05
    %v1557 = vadd.f32 %v1541, 1e-05
    %v1558 = vadd.f32 %v1542, 1e-05
    %v1559 = vadd.f32 %v1543, 1e-05
    %v1560 = vadd.f32 %v1544, 1e-05
    %v1561 = vadd.f32 %v1545, 1e-05
    %v1562 = vrsqrt.pop %v1546
    %v1563 = vmul.f32 %v1562, %v1546
    %v1564 = vmul.f32 %v1563, %v1562
    %v1565 = vmul.f32 0.5, %v1564
    %v1566 = vsub.f32 1.5, %v1565
    %v1567 = vmul.f32 %v1562, %v1566
    %vm1568 = vweird.f32 %v1546
    %vm1569 = vweird.f32 %v1562
    %vm1570 = vmor %vm1568, %vm1569
    %v1571 = vsel %vm1570, %v1562, %v1567
    %v1572 = vrsqrt.pop %v1547
    %v1573 = vmul.f32 %v1572, %v1547
    %v1574 = vmul.f32 %v1573, %v1572
    %v1575 = vmul.f32 0.5, %v1574
    %v1576 = vsub.f32 1.5, %v1575
    %v1577 = vmul.f32 %v1572, %v1576
    %vm1578 = vweird.f32 %v1547
    %vm1579 = vweird.f32 %v1572
    %vm1580 = vmor %vm1578, %vm1579
    %v1581 = vsel %vm1580, %v1572, %v1577
    %v1582 = vrsqrt.pop %v1548
    %v1583 = vmul.f32 %v1582, %v1548
    %v1584 = vmul.f32 %v1583, %v1582
    %v1585 = vmul.f32 0.5, %v1584
    %v1586 = vsub.f32 1.5, %v1585
    %v1587 = vmul.f32 %v1582, %v1586
    %vm1588 = vweird.f32 %v1548
    %vm1589 = vweird.f32 %v1582
    %vm1590 = vmor %vm1588, %vm1589
    %v1591 = vsel %vm1590, %v1582, %v1587
    %v1592 = vrsqrt.pop %v1549
    %v1593 = vmul.f32 %v1592, %v1549
    %v1594 = vmul.f32 %v1593, %v1592
    %v1595 = vmul.f32 0.5, %v1594
    %v1596 = vsub.f32 1.5, %v1595
    %v1597 = vmul.f32 %v1592, %v1596
    %vm1598 = vweird.f32 %v1549
    %vm1599 = vweird.f32 %v1592
    %vm1600 = vmor %vm1598, %vm1599
    %v1601 = vsel %vm1600, %v1592, %v1597
    %v1602 = vrsqrt.pop %v1550
    %v1603 = vmul.f32 %v1602, %v1550
    %v1604 = vmul.f32 %v1603, %v1602
    %v1605 = vmul.f32 0.5, %v1604
    %v1606 = vsub.f32 1.5, %v1605
    %v1607 = vmul.f32 %v1602, %v1606
    %vm1608 = vweird.f32 %v1550
    %vm1609 = vweird.f32 %v1602
    %vm1610 = vmor %vm1608, %vm1609
    %v1611 = vsel %vm1610, %v1602, %v1607
    %v1612 = vrsqrt.pop %v1551
    %v1613 = vmul.f32 %v1612, %v1551
    %v1614 = vmul.f32 %v1613, %v1612
    %v1615 = vmul.f32 0.5, %v1614
    %v1616 = vsub.f32 1.5, %v1615
    %v1617 = vmul.f32 %v1612, %v1616
    %vm1618 = vweird.f32 %v1551
    %vm1619 = vweird.f32 %v1612
    %vm1620 = vmor %vm1618, %vm1619
    %v1621 = vsel %vm1620, %v1612, %v1617
    %v1622 = vrsqrt.pop %v1552
    %v1623 = vmul.f32 %v1622, %v1552
    %v1624 = vmul.f32 %v1623, %v1622
    %v1625 = vmul.f32 0.5, %v1624
    %v1626 = vsub.f32 1.5, %v1625
    %v1627 = vmul.f32 %v1622, %v1626
    %vm1628 = vweird.f32 %v1552
    %vm1629 = vweird.f32 %v1622
    %vm1630 = vmor %vm1628, %vm1629
    %v1631 = vsel %vm1630, %v1622, %v1627
    %v1632 = vrsqrt.pop %v1553
    %v1633 = vmul.f32 %v1632, %v1553
    %v1634 = vmul.f32 %v1633, %v1632
    %v1635 = vmul.f32 0.5, %v1634
    %v1636 = vsub.f32 1.5, %v1635
    %v1637 = vmul.f32 %v1632, %v1636
    %vm1638 = vweird.f32 %v1553
    %vm1639 = vweird.f32 %v1632
    %vm1640 = vmor %vm1638, %vm1639
    %v1641 = vsel %vm1640, %v1632, %v1637
    %v1642 = vrsqrt.pop %v1554
    %v1643 = vmul.f32 %v1642, %v1554
    %v1644 = vmul.f32 %v1643, %v1642
    %v1645 = vmul.f32 0.5, %v1644
    %v1646 = vsub.f32 1.5, %v1645
    %v1647 = vmul.f32 %v1642, %v1646
    %vm1648 = vweird.f32 %v1554
    %vm1649 = vweird.f32 %v1642
    %vm1650 = vmor %vm1648, %vm1649
    %v1651 = vsel %vm1650, %v1642, %v1647
    %v1652 = vrsqrt.pop %v1555
    %v1653 = vmul.f32 %v1652, %v1555
    %v1654 = vmul.f32 %v1653, %v1652
    %v1655 = vmul.f32 0.5, %v1654
    %v1656 = vsub.f32 1.5, %v1655
    %v1657 = vmul.f32 %v1652, %v1656
    %vm1658 = vweird.f32 %v1555
    %vm1659 = vweird.f32 %v1652
    %vm1660 = vmor %vm1658, %vm1659
    %v1661 = vsel %vm1660, %v1652, %v1657
    %v1662 = vrsqrt.pop %v1556
    %v1663 = vmul.f32 %v1662, %v1556
    %v1664 = vmul.f32 %v1663, %v1662
    %v1665 = vmul.f32 0.5, %v1664
    %v1666 = vsub.f32 1.5, %v1665
    %v1667 = vmul.f32 %v1662, %v1666
    %vm1668 = vweird.f32 %v1556
    %vm1669 = vweird.f32 %v1662
    %vm1670 = vmor %vm1668, %vm1669
    %v1671 = vsel %vm1670, %v1662, %v1667
    %v1672 = vrsqrt.pop %v1557
    %v1673 = vmul.f32 %v1672, %v1557
    %v1674 = vmul.f32 %v1673, %v1672
    %v1675 = vmul.f32 0.5, %v1674
    %v1676 = vsub.f32 1.5, %v1675
    %v1677 = vmul.f32 %v1672, %v1676
    %vm1678 = vweird.f32 %v1557
    %vm1679 = vweird.f32 %v1672
    %vm1680 = vmor %vm1678, %vm1679
    %v1681 = vsel %vm1680, %v1672, %v1677
    %v1682 = vrsqrt.pop %v1558
    %v1683 = vmul.f32 %v1682, %v1558
    %v1684 = vmul.f32 %v1683, %v1682
    %v1685 = vmul.f32 0.5, %v1684
    %v1686 = vsub.f32 1.5, %v1685
    %v1687 = vmul.f32 %v1682, %v1686
    %vm1688 = vweird.f32 %v1558
    %vm1689 = vweird.f32 %v1682
    %vm1690 = vmor %vm1688, %vm1689
    %v1691 = vsel %vm1690, %v1682, %v1687
    %v1692 = vrsqrt.pop %v1559
    %v1693 = vmul.f32 %v1692, %v1559
    %v1694 = vmul.f32 %v1693, %v1692
    %v1695 = vmul.f32 0.5, %v1694
    %v1696 = vsub.f32 1.5, %v1695
    %v1697 = vmul.f32 %v1692, %v1696
    %vm1698 = vweird.f32 %v1559
    %vm1699 = vweird.f32 %v1692
    %vm1700 = vmor %vm1698, %vm1699
    %v1701 = vsel %vm1700, %v1692, %v1697
    %v1702 = vrsqrt.pop %v1560
    %v1703 = vmul.f32 %v1702, %v1560
    %v1704 = vmul.f32 %v1703, %v1702
    %v1705 = vmul.f32 0.5, %v1704
    %v1706 = vsub.f32 1.5, %v1705
    %v1707 = vmul.f32 %v1702, %v1706
    %vm1708 = vweird.f32 %v1560
    %vm1709 = vweird.f32 %v1702
    %vm1710 = vmor %vm1708, %vm1709
    %v1711 = vsel %vm1710, %v1702, %v1707
    %v1712 = vrsqrt.pop %v1561
    %v1713 = vmul.f32 %v1712, %v1561
    %v1714 = vmul.f32 %v1713, %v1712
    %v1715 = vmul.f32 0.5, %v1714
    %v1716 = vsub.f32 1.5, %v1715
    %v1717 = vmul.f32 %v1712, %v1716
    %vm1718 = vweird.f32 %v1561
    %vm1719 = vweird.f32 %v1712
    %vm1720 = vmor %vm1718, %vm1719
    %v1721 = vsel %vm1720, %v1712, %v1717
    %v1722 = vsub.f32 %v1368, %v1466
    %v1723 = vsub.f32 %v1369, %v1467
    %v1724 = vsub.f32 %v1370, %v1468
    %v1725 = vsub.f32 %v1371, %v1469
    %v1726 = vsub.f32 %v1372, %v1470
    %v1727 = vsub.f32 %v1373, %v1471
    %v1728 = vsub.f32 %v1374, %v1472
    %v1729 = vsub.f32 %v1375, %v1473
    %v1730 = vsub.f32 %v1376, %v1474
    %v1731 = vsub.f32 %v1377, %v1475
    %v1732 = vsub.f32 %v1378, %v1476
    %v1733 = vsub.f32 %v1379, %v1477
    %v1734 = vsub.f32 %v1380, %v1478
    %v1735 = vsub.f32 %v1381, %v1479
    %v1736 = vsub.f32 %v1382, %v1480
    %v1737 = vsub.f32 %v1383, %v1481
    %v1739 = vperm.slane %v1384, 0
    %v1741 = vmul.f32 %v1739, %v1571
    %v1742 = vmul.f32 %v1739, %v1581
    %v1743 = vmul.f32 %v1739, %v1591
    %v1744 = vmul.f32 %v1739, %v1601
    %v1745 = vmul.f32 %v1739, %v1611
    %v1746 = vmul.f32 %v1739, %v1621
    %v1747 = vmul.f32 %v1739, %v1631
    %v1748 = vmul.f32 %v1739, %v1641
    %v1749 = vmul.f32 %v1739, %v1651
    %v1750 = vmul.f32 %v1739, %v1661
    %v1751 = vmul.f32 %v1739, %v1671
    %v1752 = vmul.f32 %v1739, %v1681
    %v1753 = vmul.f32 %v1739, %v1691
    %v1754 = vmul.f32 %v1739, %v1701
    %v1755 = vmul.f32 %v1739, %v1711
    %v1756 = vmul.f32 %v1739, %v1721
    %v1757 = vmul.f32 %v1722, %v1741
    %v1758 = vmul.f32 %v1723, %v1742
    %v1759 = vmul.f32 %v1724, %v1743
    %v1760 = vmul.f32 %v1725, %v1744
    %v1761 = vmul.f32 %v1726, %v1745
    %v1762 = vmul.f32 %v1727, %v1746
    %v1763 = vmul.f32 %v1728, %v1747
    %v1764 = vmul.f32 %v1729, %v1748
    %v1765 = vmul.f32 %v1730, %v1749
    %v1766 = vmul.f32 %v1731, %v1750
    %v1767 = vmul.f32 %v1732, %v1751
    %v1768 = vmul.f32 %v1733, %v1752
    %v1769 = vmul.f32 %v1734, %v1753
    %v1770 = vmul.f32 %v1735, %v1754
    %v1771 = vmul.f32 %v1736, %v1755
    %v1772 = vmul.f32 %v1737, %v1756
    %v1774 = vperm.slane %v1385, 0
    %v1776 = vadd.f32 %v1757, %v1774
    %v1777 = vadd.f32 %v1758, %v1774
    %v1778 = vadd.f32 %v1759, %v1774
    %v1779 = vadd.f32 %v1760, %v1774
    %v1780 = vadd.f32 %v1761, %v1774
    %v1781 = vadd.f32 %v1762, %v1774
    %v1782 = vadd.f32 %v1763, %v1774
    %v1783 = vadd.f32 %v1764, %v1774
    %v1784 = vadd.f32 %v1765, %v1774
    %v1785 = vadd.f32 %v1766, %v1774
    %v1786 = vadd.f32 %v1767, %v1774
    %v1787 = vadd.f32 %v1768, %v1774
    %v1788 = vadd.f32 %v1769, %v1774
    %v1789 = vadd.f32 %v1770, %v1774
    %v1790 = vadd.f32 %v1771, %v1774
    %v1791 = vadd.f32 %v1772, %v1774
    %1792 = vst [vmem:[#allocation2] sm:$0xff] %v1776
    %1793 = vst [vmem:[#allocation2 + $0x8] sm:$0xff] %v1777
    %1794 = vst [vmem:[#allocation2 + $0x10] sm:$0xff] %v1778
    %1795 = vst [vmem:[#allocation2 + $0x18] sm:$0xff] %v1779
    %1796 = vst [vmem:[#allocation2 + $0x20] sm:$0xff] %v1780
    %1797 = vst [vmem:[#allocation2 + $0x28] sm:$0xff] %v1781
    %1798 = vst [vmem:[#allocation2 + $0x30] sm:$0xff] %v1782
    %1799 = vst [vmem:[#allocation2 + $0x38] sm:$0xff] %v1783
    %1800 = vst [vmem:[#allocation2 + $0x40] sm:$0xff] %v1784
    %1801 = vst [vmem:[#allocation2 + $0x48] sm:$0xff] %v1785
    %1802 = vst [vmem:[#allocation2 + $0x50] sm:$0xff] %v1786
    %1803 = vst [vmem:[#allocation2 + $0x58] sm:$0xff] %v1787
    %1804 = vst [vmem:[#allocation2 + $0x60] sm:$0xff] %v1788
    %1805 = vst [vmem:[#allocation2 + $0x68] sm:$0xff] %v1789
    %1806 = vst [vmem:[#allocation2 + $0x70] sm:$0xff] %v1790
    %1807 = vst [vmem:[#allocation2 + $0x78] sm:$0xff] %v1791
    // Predicated region
    $region50: #{tpu_custom_call.1} parent=1 // pred_check
      _
    $region51: #{tpu_custom_call.1} parent=1 // pred_check_branch
      %1809 = sbr.rel (0) target = $region53
    $region52: #{tpu_custom_call.1} parent=1 // pred_region
      %1811 = vsyncadd [#allocation3], 0
      %s1812 = sshll.u32 [#allocation2], 4
      %s1813 = int_to_ptr.vmem [resolvable:$true] %s1812
      %s1814 = sshll.u32 %s12, 4
      %s1815 = int_to_ptr.hbm [resolvable:$true] %s1814
      %1820 = dma.vmem_to_hbm [thread:$0]  %s1813, 2048, %s1815, [#allocation3], 128, 128, 8
    $region53: #{tpu_custom_call.1} parent=1 // pred_fallthru
      _
    // Predicated region
    $region54: #{tpu_custom_call.1} parent=1 // pred_check
      _
    $region55: #{tpu_custom_call.1} parent=1 // pred_check_branch
      %1822 = sbr.rel (0) target = $region57
    $region56: #{tpu_custom_call.1} parent=1 // pred_region
      %1824 = dma.done [#allocation3], 2048
    $region57: #{tpu_custom_call.1} parent=1 // pred_fallthru
      _
    %1825 = vsyncpa [#allocation3], 1

</llo_original>
